<compile_context>
chip_gen: v7x
topology: tpu7x:2x2x1
jax: 0.10.0
libtpu: 0.0.40
codegen_flags: <defaults>
</compile_context>

<pallas_src>
import math
import functools
import jax
import jax.numpy as jnp
import numpy as np
from jax.experimental import pallas as pl
from jax.experimental.pallas import tpu as pltpu


def _round_up(x, m):
    return (x + m - 1) // m * m


# ----------------------------------------------------------------------------
# Rs bookkeeping (plain python, __init__-time glue)
# ----------------------------------------------------------------------------
def rs_dim(Rs):
    return sum(mul * (2 * l + 1) for mul, l, _ in Rs)


def rs_mul_dim(Rs):
    return sum(mul for mul, _, _ in Rs)


def rs_irrep_dim(Rs):
    return sum(2 * l + 1 for _, l, _ in Rs)


def selection_rule_in_out_sh(l_in, p_in, l_out, p_out):
    # o3.selection_rule_in_out_sh with parity-free irreps (p = 0)
    return list(range(abs(l_in - l_out), l_in + l_out + 1))


def tensor_product_Rs_f(Rs_in, Rs_out):
    # Rs_f of rs.tensor_product(Rs_in, selection_rule, Rs_out), sorted + simplified.
    by_l = {}
    for mul_out, l_out, p_out in Rs_out:
        for mul_in, l_in, p_in in Rs_in:
            for l_f in selection_rule_in_out_sh(l_in, p_in, l_out, p_out):
                by_l[l_f] = by_l.get(l_f, 0) + mul_out * mul_in
    return [(by_l[l], l, 0) for l in sorted(by_l)]


def check_input_output(Rs_in, Rs_out):
    for _, l_out, p_out in Rs_out:
        if not any(selection_rule_in_out_sh(l_in, p_in, l_out, p_out)
                   for _, l_in, p_in in Rs_in):
            raise ValueError(f"output (l={l_out}, p={p_out}) cannot be generated")
    for _, l_in, p_in in Rs_in:
        if not any(selection_rule_in_out_sh(l_in, p_in, l_out, p_out)
                   for _, l_out, p_out in Rs_out):
            raise ValueError(f"input (l={l_in}, p={p_in}) cannot be used")


# ----------------------------------------------------------------------------
# Real spherical harmonics columns (m = -l..l) from unit-vector components.
# Works on 2-D (Z,1) columns (kernel) or any broadcastable arrays (reference).
# TODO(synk): only l <= 2 implemented.
# ----------------------------------------------------------------------------
def _sh_columns(Ls, x, y, z):
    cols = []
    for l in Ls:
        if l == 0:
            cols.append(jnp.full_like(x, 0.5 / math.sqrt(math.pi)))
        elif l == 1:
            c = math.sqrt(3.0 / (4.0 * math.pi))
            cols += [c * y, c * z, c * x]
        elif l == 2:
            c = math.sqrt(15.0 / (4.0 * math.pi))
            cols += [c * x * y,
                     c * y * z,
                     0.25 * math.sqrt(5.0 / math.pi) * (3.0 * z * z - 1.0),
                     c * x * z,
                     0.5 * c * (x * x - y * y)]
        else:
            raise NotImplementedError(f"spherical harmonics l={l} not implemented")
    return cols


# ----------------------------------------------------------------------------
# Fused Pallas kernel.  Per (tz, 3) tile of points:
#   radii, mask, unit vector          (VPU, (tz,1) columns)
#   Y columns (spherical harmonics)   (VPU)
#   h = tanh(radii*W1 + b1)           (VPU + EUP)
#   r_exp = h @ W2E + b2E             (MXU, (tz,hidden)x(hidden,YWp); E_R folded in)
#   y_exp = sum_y Ycol_y * E_Y[y]     (VPU broadcast-MACs; no expansion matmul)
#   out   = (y_exp * r_exp) @ Qm2     (single MXU contraction, N = IJ unpadded)
#   rows with mask==0 get the flattened linear kernel k2 instead.
# ----------------------------------------------------------------------------
def _make_mix_kernel(Ls, r_eps):
    def kernel(r_ref, ey_ref, w1_ref, b1_ref, w2e_ref, b2e_ref, q_ref, k2_ref,
               out_ref):
        r = r_ref[...]                                  # (tz, 3)
        px = r[:, 0:1]
        py = r[:, 1:2]
        pz = r[:, 2:3]

        radii = jnp.sqrt(px * px + py * py + pz * pz)   # (tz, 1)
        mask = radii > r_eps                            # (tz, 1) bool

        # Safe direction for (near-)zero / padded points: those rows are
        # overwritten by kernel2 below, this just keeps Y finite.
        sx = jnp.where(mask, px, 0.0)
        sy = jnp.where(mask, py, 0.0)
        sz = jnp.where(mask, pz, 1.0)
        nrm = jnp.sqrt(sx * sx + sy * sy + sz * sz)
        ux = sx / nrm
        uy = sy / nrm
        uz = sz / nrm

        cols = _sh_columns(Ls, ux, uy, uz)              # list of (tz, 1)

        # Radial MLP (EUP tanh).  K=1 first layer is a plain broadcast multiply.
        h = jnp.tanh(radii * w1_ref[...] + b1_ref[...])               # (tz, hidden)
        r_exp = jnp.dot(h, w2e_ref[...],
                        preferred_element_type=jnp.float32) + b2e_ref[...]  # (tz, YWp)

        # Y expansion onto the fused (y, w) axis via VPU broadcast-MACs.
        y_exp = cols[0] * ey_ref[0:1, :]
        for yi in range(1, len(cols)):
            y_exp = y_exp + cols[yi] * ey_ref[yi:yi + 1, :]            # (tz, YWp)

        f = y_exp * r_exp                                              # (tz, YWp)
        acc = jnp.dot(f, q_ref[...], preferred_element_type=jnp.float32)  # (tz, IJ)

        out_ref[...] = jnp.where(mask, acc, k2_ref[...]).astype(out_ref.dtype)

    return kernel


# ----------------------------------------------------------------------------
# Kernel module (parameter setup is plain python/numpy glue; the hot path is
# one fused Pallas call over tiles of points).
# ----------------------------------------------------------------------------
class KernelPallas:
    def __init__(self, Rs_in, Rs_out, key, hidden=16):
        self.Rs_in = list(Rs_in)
        self.Rs_out = list(Rs_out)
        check_input_output(self.Rs_in, self.Rs_out)

        Rs_f = tensor_product_Rs_f(self.Rs_in, self.Rs_out)
        self.Rs_f = Rs_f
        self.Ls = [l for _, l, _ in Rs_f]
        self.hidden = hidden
        self.dim_in = rs_dim(self.Rs_in)
        self.dim_out = rs_dim(self.Rs_out)
        self.ydim = rs_irrep_dim(Rs_f)     # irrep_dim(Rs_f)
        self.rdim = rs_mul_dim(Rs_f)       # mul_dim(Rs_f)
        self.IJ = self.dim_out * self.dim_in
        self.YW = self.ydim * self.rdim
        self.YWp = _round_up(self.YW, 128)   # fused (y,w) axis, lane-padded

        k_q, k_rad, k_lin = jax.random.split(key, 3)

        # TODO(synk): kernel_geometric's Wigner-3j / Clebsch-Gordan construction of
        # Q (rs.tensor_product + sort + norm_Y) is not reproduced; Q is a
        # deterministic, shape-correct random buffer
        # [dim_out, dim_in, irrep_dim(Rs_f), mul_dim(Rs_f)].
        self.Q = jax.random.normal(
            k_q, (self.dim_out, self.dim_in, self.ydim, self.rdim), jnp.float32)

        # Fused mixing matrix used by the Pallas kernel (columns NOT padded):
        #   Qm2[y*rdim + w, i*dim_in + j] = Q[i, j, y, w]
        q_np = np.asarray(self.Q)
        qm2 = np.transpose(q_np, (2, 3, 0, 1)).reshape(self.YW, self.IJ)
        qm2_p = np.zeros((self.YWp, self.IJ), np.float32)
        qm2_p[:self.YW] = qm2
        self.Qm2 = jnp.asarray(qm2_p)                    # (YWp, IJ)

        # Constant 0/1 Y-expansion rows:  E_Y[y, y*rdim + w] = 1.
        ey = np.zeros((self.ydim, self.YWp), np.float32)
        for y in range(self.ydim):
            ey[y, y * self.rdim:(y + 1) * self.rdim] = 1.0
        self.E_Y = jnp.asarray(ey)                       # (ydim, YWp)

        # RadialModel: small deterministic MLP  R -> R^{mul_dim(Rs_f)}
        k1, k2_, k3, k4 = jax.random.split(k_rad, 4)
        self._W1 = jax.random.normal(k1, (1, hidden), jnp.float32)
        self._b1 = 0.1 * jax.random.normal(k2_, (1, hidden), jnp.float32)
        self._W2 = jax.random.normal(k3, (hidden, self.rdim), jnp.float32) / math.sqrt(hidden)
        self._b2 = 0.1 * jax.random.normal(k4, (1, self.rdim), jnp.float32)

        # Fold the R-expansion E_R (er[w, y*rdim+w] = 1) into the second MLP
        # layer (exact copy placement, done in numpy -> no rounding):
        #   W2E[k, y*rdim+w] = W2[k, w],  b2E[0, y*rdim+w] = b2[0, w]
        w2_np = np.asarray(self._W2)
        b2_np = np.asarray(self._b2)
        w2e = np.zeros((hidden, self.YWp), np.float32)
        b2e = np.zeros((1, self.YWp), np.float32)
        for y in range(self.ydim):
            w2e[:, y * self.rdim:(y + 1) * self.rdim] = w2_np
            b2e[:, y * self.rdim:(y + 1) * self.rdim] = b2_np
        self.W2E = jnp.asarray(w2e)                      # (hidden, YWp)
        self.b2E = jnp.asarray(b2e)                      # (1, YWp)

        # KernelLinear(): equivariant l_in==l_out block-diagonal kernel.
        # TODO(synk): approximates e3nn's KernelLinear normalization.
        self.kernel2 = self._make_kernel_linear(k_lin)   # (dim_out, dim_in)
        self.k2_flat = self.kernel2.reshape(1, self.IJ)  # (1, IJ) unpadded

    def _make_kernel_linear(self, key):
        K = np.zeros((self.dim_out, self.dim_in), np.float32)
        keys = jax.random.split(key, len(self.Rs_out) * len(self.Rs_in))
        ki, i0 = 0, 0
        for mul_out, l_out, p_out in self.Rs_out:
            j0 = 0
            for mul_in, l_in, p_in in self.Rs_in:
                if l_out == l_in and p_out == p_in:
                    w = np.asarray(jax.random.normal(keys[ki], (mul_out, mul_in),
                                                     jnp.float32)) / math.sqrt(mul_in)
                    blk = np.kron(w, np.eye(2 * l_in + 1, dtype=np.float32))
                    K[i0:i0 + mul_out * (2 * l_out + 1),
                      j0:j0 + mul_in * (2 * l_in + 1)] = blk
                ki += 1
                j0 += mul_in * (2 * l_in + 1)
            i0 += mul_out * (2 * l_out + 1)
        return jnp.asarray(K)

    # ------------------------------------------------------------------ Pallas
    def _mix(self, r_flat, r_eps, tz):
        Zp = r_flat.shape[0]
        kernel = _make_mix_kernel(tuple(self.Ls), float(r_eps))
        return pl.pallas_call(
            kernel,
            out_shape=jax.ShapeDtypeStruct((Zp, self.IJ), jnp.float32),
            grid_spec=pltpu.PrefetchScalarGridSpec(
                num_scalar_prefetch=0,
                grid=(Zp // tz,),
                in_specs=[
                    pl.BlockSpec((tz, 3), lambda i: (i, 0)),                   # points
                    pl.BlockSpec((self.ydim, self.YWp), lambda i: (0, 0)),     # E_Y
                    pl.BlockSpec((1, self.hidden), lambda i: (0, 0)),          # W1
                    pl.BlockSpec((1, self.hidden), lambda i: (0, 0)),          # b1
                    pl.BlockSpec((self.hidden, self.YWp), lambda i: (0, 0)),   # W2E
                    pl.BlockSpec((1, self.YWp), lambda i: (0, 0)),             # b2E
                    pl.BlockSpec((self.YWp, self.IJ), lambda i: (0, 0)),       # Qm2
                    pl.BlockSpec((1, self.IJ), lambda i: (0, 0)),              # k2
                ],
                out_specs=pl.BlockSpec((tz, self.IJ), lambda i: (i, 0)),
            ),
            compiler_params=pltpu.CompilerParams(
                # Points are independent -> shards across both v7x TensorCores.
                dimension_semantics=("parallel",),
                # Footprint at tz=2048 is < ~10 MiB; 32 MiB is safe everywhere.
                vmem_limit_bytes=32 * 1024 * 1024,
            ),
        )(r_flat, self.E_Y, self._W1, self._b1, self.W2E, self.b2E,
          self.Qm2, self.k2_flat)

    def __call__(self, r, r_eps=0.0, tz_max=2048):
        size = r.shape[:-1]
        assert r.shape[-1] == 3
        r_flat = r.reshape(-1, 3).astype(jnp.float32)
        Z = r_flat.shape[0]

        # Tile selection: big tiles to amortize the ~0.35us per-step overhead,
        # but keep >= 2 grid steps whenever Z allows so the parallel axis can
        # shard across both v7x TensorCores.  Always a multiple of 8.
        tz_max = _round_up(max(int(tz_max), 8), 8)
        tz = min(tz_max, _round_up(max((Z + 1) // 2, 8), 8))
        Zp = _round_up(max(Z, tz), tz)
        if Zp != Z:
            # Padded rows have radius 0 -> mask 0 -> routed to k2 -> sliced off.
            r_flat = jnp.pad(r_flat, ((0, Zp - Z), (0, 0)))

        out_flat = self._mix(r_flat, r_eps, tz)          # (Zp, IJ), IJ unpadded
        out = out_flat[:Z] if Zp != Z else out_flat
        return out.reshape(*size, self.dim_out, self.dim_in)

    # ------------------------------------------------- pure-JAX reference path
    def reference(self, r, r_eps=0.0):
        size = r.shape[:-1]
        r_flat = r.reshape(-1, 3).astype(jnp.float32)
        radii = jnp.linalg.norm(r_flat, axis=1)
        mask = radii > r_eps
        safe = jnp.where(mask[:, None], r_flat,
                         jnp.array([0.0, 0.0, 1.0], jnp.float32))
        unit = safe / jnp.linalg.norm(safe, axis=1, keepdims=True)
        cols = _sh_columns(self.Ls, unit[:, 0:1], unit[:, 1:2], unit[:, 2:3])
        Y = jnp.concatenate(cols, axis=-1)                            # (Z, ydim)
        h = jnp.tanh(radii[:, None] * self._W1 + self._b1)
        Rfeat = jnp.dot(h, self._W2,
                        precision=jax.lax.Precision.HIGHEST) + self._b2
        kernel1 = jnp.einsum('ijyw,zy,zw->zij', self.Q, Y, Rfeat,
                             precision=jax.lax.Precision.HIGHEST)
        kernel = jnp.where(mask[:, None, None], kernel1, self.kernel2[None])
        return kernel.reshape(*size, self.dim_out, self.dim_in)


if __name__ == "__main__":
    key = jax.random.PRNGKey(0)
    k_params, k_r = jax.random.split(key)

    Rs_in = [(2, 0, 0), (1, 1, 0)]    # (multiplicity, l, parity)
    Rs_out = [(2, 0, 0), (1, 1, 0)]
    kern = KernelPallas(Rs_in, Rs_out, k_params)

    # Small deterministic input, with a couple of zero vectors to exercise the
    # radii <= r_eps (kernel2 / self.linear()) branch.
    r = jax.random.normal(k_r, (2, 64, 3), jnp.float32)
    r = r.at[0, 0].set(0.0)
    r = r.at[1, 5].set(0.0)

    out = jax.block_until_ready(kern(r))            # [2, 64, dim_out, dim_in]
    ref = jax.block_until_ready(kern.reference(r))
    # Tolerance sized for the TPU MXU's default f32 matmul precision (bf16
    # passes) inside the kernel; structural errors would be O(1) and caught.
    np.testing.assert_allclose(np.asarray(out), np.asarray(ref),
                               rtol=2e-2, atol=5e-2)
    print("KERNEL_OK")
</pallas_src>

<mosaic_0001>
module attributes {stable_mosaic.version = 11 : i64} {
  func.func @kernel(%arg0: i32, %arg1: memref<64x3xf32, #tpu.memory_space<vmem>>, %arg2: memref<9x128xf32, #tpu.memory_space<vmem>>, %arg3: memref<1x16xf32, #tpu.memory_space<vmem>>, %arg4: memref<1x16xf32, #tpu.memory_space<vmem>>, %arg5: memref<16x128xf32, #tpu.memory_space<vmem>>, %arg6: memref<1x128xf32, #tpu.memory_space<vmem>>, %arg7: memref<128x25xf32, #tpu.memory_space<vmem>>, %arg8: memref<1x25xf32, #tpu.memory_space<vmem>>, %arg9: memref<64x25xf32, #tpu.memory_space<vmem>>) attributes {dimension_semantics = [#tpu.dimension_semantics<parallel>], iteration_bounds = array<i64: 2>, scalar_prefetch = 0 : i64, scratch_operands = 0 : i64, tpu.core_type = #tpu.core_type<tc>, window_params = [{transform_indices = @transform_0, window_bounds = array<i64: 64, 3>}, {pipeline_mode = #tpu.pipeline_mode<synchronous>, transform_indices = @transform_1, window_bounds = array<i64: 9, 128>}, {pipeline_mode = #tpu.pipeline_mode<synchronous>, transform_indices = @transform_2, window_bounds = array<i64: 1, 16>}, {pipeline_mode = #tpu.pipeline_mode<synchronous>, transform_indices = @transform_3, window_bounds = array<i64: 1, 16>}, {pipeline_mode = #tpu.pipeline_mode<synchronous>, transform_indices = @transform_4, window_bounds = array<i64: 16, 128>}, {pipeline_mode = #tpu.pipeline_mode<synchronous>, transform_indices = @transform_5, window_bounds = array<i64: 1, 128>}, {pipeline_mode = #tpu.pipeline_mode<synchronous>, transform_indices = @transform_6, window_bounds = array<i64: 128, 25>}, {pipeline_mode = #tpu.pipeline_mode<synchronous>, transform_indices = @transform_7, window_bounds = array<i64: 1, 25>}, {transform_indices = @transform_8, window_bounds = array<i64: 64, 25>}]} {
    %c0 = arith.constant 0 : index
    %c0_0 = arith.constant 0 : index
    %0 = vector.load %arg1[%c0, %c0_0] : memref<64x3xf32, #tpu.memory_space<vmem>>, vector<64x3xf32>
    %1 = vector.extract_strided_slice %0 {offsets = [0, 0], sizes = [64, 1], strides = [1, 1]} : vector<64x3xf32> to vector<64x1xf32>
    %2 = vector.extract_strided_slice %0 {offsets = [0, 1], sizes = [64, 1], strides = [1, 1]} : vector<64x3xf32> to vector<64x1xf32>
    %3 = vector.extract_strided_slice %0 {offsets = [0, 2], sizes = [64, 1], strides = [1, 1]} : vector<64x3xf32> to vector<64x1xf32>
    %4 = arith.mulf %1, %1 : vector<64x1xf32>
    %5 = arith.mulf %2, %2 : vector<64x1xf32>
    %6 = arith.addf %4, %5 : vector<64x1xf32>
    %7 = arith.mulf %3, %3 : vector<64x1xf32>
    %8 = arith.addf %6, %7 : vector<64x1xf32>
    %9 = math.sqrt %8 : vector<64x1xf32>
    %cst = arith.constant 0.000000e+00 : f32
    %10 = vector.broadcast %cst : f32 to vector<64x1xf32>
    %11 = arith.cmpf ogt, %9, %10 : vector<64x1xf32>
    %cst_1 = arith.constant 0.000000e+00 : f32
    %12 = vector.broadcast %cst_1 : f32 to vector<64x1xf32>
    %13 = arith.select %11, %1, %12 : vector<64x1xi1>, vector<64x1xf32>
    %cst_2 = arith.constant 0.000000e+00 : f32
    %14 = vector.broadcast %cst_2 : f32 to vector<64x1xf32>
    %15 = arith.select %11, %2, %14 : vector<64x1xi1>, vector<64x1xf32>
    %cst_3 = arith.constant 1.000000e+00 : f32
    %16 = vector.broadcast %cst_3 : f32 to vector<64x1xf32>
    %17 = arith.select %11, %3, %16 : vector<64x1xi1>, vector<64x1xf32>
    %18 = arith.mulf %13, %13 : vector<64x1xf32>
    %19 = arith.mulf %15, %15 : vector<64x1xf32>
    %20 = arith.addf %18, %19 : vector<64x1xf32>
    %21 = arith.mulf %17, %17 : vector<64x1xf32>
    %22 = arith.addf %20, %21 : vector<64x1xf32>
    %23 = math.sqrt %22 : vector<64x1xf32>
    %24 = arith.divf %13, %23 : vector<64x1xf32>
    %25 = arith.divf %15, %23 : vector<64x1xf32>
    %26 = arith.divf %17, %23 : vector<64x1xf32>
    %cst_4 = arith.constant 0.282094806 : f32
    %27 = vector.broadcast %cst_4 : f32 to vector<64x1xf32>
    %cst_5 = arith.constant 0.488602519 : f32
    %28 = vector.broadcast %cst_5 : f32 to vector<64x1xf32>
    %29 = arith.mulf %28, %25 : vector<64x1xf32>
    %cst_6 = arith.constant 0.488602519 : f32
    %30 = vector.broadcast %cst_6 : f32 to vector<64x1xf32>
    %31 = arith.mulf %30, %26 : vector<64x1xf32>
    %cst_7 = arith.constant 0.488602519 : f32
    %32 = vector.broadcast %cst_7 : f32 to vector<64x1xf32>
    %33 = arith.mulf %32, %24 : vector<64x1xf32>
    %cst_8 = arith.constant 1.09254849 : f32
    %34 = vector.broadcast %cst_8 : f32 to vector<64x1xf32>
    %35 = arith.mulf %34, %24 : vector<64x1xf32>
    %36 = arith.mulf %35, %25 : vector<64x1xf32>
    %cst_9 = arith.constant 1.09254849 : f32
    %37 = vector.broadcast %cst_9 : f32 to vector<64x1xf32>
    %38 = arith.mulf %37, %25 : vector<64x1xf32>
    %39 = arith.mulf %38, %26 : vector<64x1xf32>
    %cst_10 = arith.constant 3.000000e+00 : f32
    %40 = vector.broadcast %cst_10 : f32 to vector<64x1xf32>
    %41 = arith.mulf %40, %26 : vector<64x1xf32>
    %42 = arith.mulf %41, %26 : vector<64x1xf32>
    %cst_11 = arith.constant 1.000000e+00 : f32
    %43 = vector.broadcast %cst_11 : f32 to vector<64x1xf32>
    %44 = arith.subf %42, %43 : vector<64x1xf32>
    %cst_12 = arith.constant 0.31539157 : f32
    %45 = vector.broadcast %cst_12 : f32 to vector<64x1xf32>
    %46 = arith.mulf %45, %44 : vector<64x1xf32>
    %cst_13 = arith.constant 1.09254849 : f32
    %47 = vector.broadcast %cst_13 : f32 to vector<64x1xf32>
    %48 = arith.mulf %47, %24 : vector<64x1xf32>
    %49 = arith.mulf %48, %26 : vector<64x1xf32>
    %50 = arith.mulf %24, %24 : vector<64x1xf32>
    %51 = arith.mulf %25, %25 : vector<64x1xf32>
    %52 = arith.subf %50, %51 : vector<64x1xf32>
    %cst_14 = arith.constant 0.546274245 : f32
    %53 = vector.broadcast %cst_14 : f32 to vector<64x1xf32>
    %54 = arith.mulf %53, %52 : vector<64x1xf32>
    %c0_15 = arith.constant 0 : index
    %c0_16 = arith.constant 0 : index
    %55 = vector.load %arg3[%c0_15, %c0_16] : memref<1x16xf32, #tpu.memory_space<vmem>>, vector<1x16xf32>
    %56 = vector.broadcast %9 : vector<64x1xf32> to vector<64x16xf32>
    %57 = vector.broadcast %55 : vector<1x16xf32> to vector<64x16xf32>
    %58 = arith.mulf %56, %57 : vector<64x16xf32>
    %c0_17 = arith.constant 0 : index
    %c0_18 = arith.constant 0 : index
    %59 = vector.load %arg4[%c0_17, %c0_18] : memref<1x16xf32, #tpu.memory_space<vmem>>, vector<1x16xf32>
    %60 = vector.broadcast %59 : vector<1x16xf32> to vector<64x16xf32>
    %61 = arith.addf %58, %60 : vector<64x16xf32>
    %62 = math.tanh %61 : vector<64x16xf32>
    %c0_19 = arith.constant 0 : index
    %c0_20 = arith.constant 0 : index
    %63 = vector.load %arg5[%c0_19, %c0_20] : memref<16x128xf32, #tpu.memory_space<vmem>>, vector<16x128xf32>
    %cst_21 = arith.constant dense<0.000000e+00> : vector<64x128xf32>
    %64 = tpu.matmul %62, %63, %cst_21 {dimension_numbers = #tpu.dot_dimension_numbers<[1], [0], [0], [1], [0, 0, 1, 1], [], []>} : vector<64x16xf32>, vector<16x128xf32>, vector<64x128xf32> -> vector<64x128xf32>
    %c0_22 = arith.constant 0 : index
    %c0_23 = arith.constant 0 : index
    %65 = vector.load %arg6[%c0_22, %c0_23] : memref<1x128xf32, #tpu.memory_space<vmem>>, vector<1x128xf32>
    %66 = vector.broadcast %65 : vector<1x128xf32> to vector<64x128xf32>
    %67 = arith.addf %64, %66 : vector<64x128xf32>
    %c0_24 = arith.constant 0 : index
    %c0_25 = arith.constant 0 : index
    %68 = vector.load %arg2[%c0_24, %c0_25] : memref<9x128xf32, #tpu.memory_space<vmem>>, vector<1x128xf32>
    %69 = vector.broadcast %27 : vector<64x1xf32> to vector<64x128xf32>
    %70 = vector.broadcast %68 : vector<1x128xf32> to vector<64x128xf32>
    %71 = arith.mulf %69, %70 : vector<64x128xf32>
    %c1 = arith.constant 1 : index
    %c0_26 = arith.constant 0 : index
    %72 = vector.load %arg2[%c1, %c0_26] : memref<9x128xf32, #tpu.memory_space<vmem>>, vector<1x128xf32>
    %73 = vector.broadcast %29 : vector<64x1xf32> to vector<64x128xf32>
    %74 = vector.broadcast %72 : vector<1x128xf32> to vector<64x128xf32>
    %75 = arith.mulf %73, %74 : vector<64x128xf32>
    %76 = arith.addf %71, %75 : vector<64x128xf32>
    %c2 = arith.constant 2 : index
    %c0_27 = arith.constant 0 : index
    %77 = vector.load %arg2[%c2, %c0_27] : memref<9x128xf32, #tpu.memory_space<vmem>>, vector<1x128xf32>
    %78 = vector.broadcast %31 : vector<64x1xf32> to vector<64x128xf32>
    %79 = vector.broadcast %77 : vector<1x128xf32> to vector<64x128xf32>
    %80 = arith.mulf %78, %79 : vector<64x128xf32>
    %81 = arith.addf %76, %80 : vector<64x128xf32>
    %c3 = arith.constant 3 : index
    %c0_28 = arith.constant 0 : index
    %82 = vector.load %arg2[%c3, %c0_28] : memref<9x128xf32, #tpu.memory_space<vmem>>, vector<1x128xf32>
    %83 = vector.broadcast %33 : vector<64x1xf32> to vector<64x128xf32>
    %84 = vector.broadcast %82 : vector<1x128xf32> to vector<64x128xf32>
    %85 = arith.mulf %83, %84 : vector<64x128xf32>
    %86 = arith.addf %81, %85 : vector<64x128xf32>
    %c4 = arith.constant 4 : index
    %c0_29 = arith.constant 0 : index
    %87 = vector.load %arg2[%c4, %c0_29] : memref<9x128xf32, #tpu.memory_space<vmem>>, vector<1x128xf32>
    %88 = vector.broadcast %36 : vector<64x1xf32> to vector<64x128xf32>
    %89 = vector.broadcast %87 : vector<1x128xf32> to vector<64x128xf32>
    %90 = arith.mulf %88, %89 : vector<64x128xf32>
    %91 = arith.addf %86, %90 : vector<64x128xf32>
    %c5 = arith.constant 5 : index
    %c0_30 = arith.constant 0 : index
    %92 = vector.load %arg2[%c5, %c0_30] : memref<9x128xf32, #tpu.memory_space<vmem>>, vector<1x128xf32>
    %93 = vector.broadcast %39 : vector<64x1xf32> to vector<64x128xf32>
    %94 = vector.broadcast %92 : vector<1x128xf32> to vector<64x128xf32>
    %95 = arith.mulf %93, %94 : vector<64x128xf32>
    %96 = arith.addf %91, %95 : vector<64x128xf32>
    %c6 = arith.constant 6 : index
    %c0_31 = arith.constant 0 : index
    %97 = vector.load %arg2[%c6, %c0_31] : memref<9x128xf32, #tpu.memory_space<vmem>>, vector<1x128xf32>
    %98 = vector.broadcast %46 : vector<64x1xf32> to vector<64x128xf32>
    %99 = vector.broadcast %97 : vector<1x128xf32> to vector<64x128xf32>
    %100 = arith.mulf %98, %99 : vector<64x128xf32>
    %101 = arith.addf %96, %100 : vector<64x128xf32>
    %c7 = arith.constant 7 : index
    %c0_32 = arith.constant 0 : index
    %102 = vector.load %arg2[%c7, %c0_32] : memref<9x128xf32, #tpu.memory_space<vmem>>, vector<1x128xf32>
    %103 = vector.broadcast %49 : vector<64x1xf32> to vector<64x128xf32>
    %104 = vector.broadcast %102 : vector<1x128xf32> to vector<64x128xf32>
    %105 = arith.mulf %103, %104 : vector<64x128xf32>
    %106 = arith.addf %101, %105 : vector<64x128xf32>
    %c8 = arith.constant 8 : index
    %c0_33 = arith.constant 0 : index
    %107 = vector.load %arg2[%c8, %c0_33] : memref<9x128xf32, #tpu.memory_space<vmem>>, vector<1x128xf32>
    %108 = vector.broadcast %54 : vector<64x1xf32> to vector<64x128xf32>
    %109 = vector.broadcast %107 : vector<1x128xf32> to vector<64x128xf32>
    %110 = arith.mulf %108, %109 : vector<64x128xf32>
    %111 = arith.addf %106, %110 : vector<64x128xf32>
    %112 = arith.mulf %111, %67 : vector<64x128xf32>
    %c0_34 = arith.constant 0 : index
    %c0_35 = arith.constant 0 : index
    %113 = vector.load %arg7[%c0_34, %c0_35] : memref<128x25xf32, #tpu.memory_space<vmem>>, vector<128x25xf32>
    %cst_36 = arith.constant dense<0.000000e+00> : vector<64x25xf32>
    %114 = tpu.matmul %112, %113, %cst_36 {dimension_numbers = #tpu.dot_dimension_numbers<[1], [0], [0], [1], [0, 0, 1, 1], [], []>} : vector<64x128xf32>, vector<128x25xf32>, vector<64x25xf32> -> vector<64x25xf32>
    %c0_37 = arith.constant 0 : index
    %c0_38 = arith.constant 0 : index
    %115 = vector.load %arg8[%c0_37, %c0_38] : memref<1x25xf32, #tpu.memory_space<vmem>>, vector<1x25xf32>
    %116 = vector.shape_cast %11 : vector<64x1xi1> to vector<64x1xi1>
    %117 = vector.broadcast %116 : vector<64x1xi1> to vector<64x25xi1>
    %118 = vector.shape_cast %115 : vector<1x25xf32> to vector<1x25xf32>
    %119 = vector.broadcast %118 : vector<1x25xf32> to vector<64x25xf32>
    %120 = arith.select %117, %114, %119 : vector<64x25xi1>, vector<64x25xf32>
    %c0_39 = arith.constant 0 : index
    %c0_40 = arith.constant 0 : index
    %121 = vector.load %arg9[%c0_39, %c0_40] : memref<64x25xf32, #tpu.memory_space<vmem>>, vector<64x25xf32>
    tpu.vector_store %arg9[%c0_39, %c0_40], %120 {strides = array<i32>} : memref<64x25xf32, #tpu.memory_space<vmem>>, vector<64x25xf32>,
    return
  }
  func.func @transform_0(%arg0: i32) -> (i32, i32) {
    %c0_i32 = arith.constant 0 : i32
    %c0_i32_0 = arith.constant 0 : i32
    return %arg0, %c0_i32 : i32, i32
  }
  func.func @transform_1(%arg0: i32) -> (i32, i32) {
    %c0_i32 = arith.constant 0 : i32
    %c0_i32_0 = arith.constant 0 : i32
    %c0_i32_1 = arith.constant 0 : i32
    return %c0_i32, %c0_i32_0 : i32, i32
  }
  func.func @transform_2(%arg0: i32) -> (i32, i32) {
    %c0_i32 = arith.constant 0 : i32
    %c0_i32_0 = arith.constant 0 : i32
    %c0_i32_1 = arith.constant 0 : i32
    return %c0_i32, %c0_i32_0 : i32, i32
  }
  func.func @transform_3(%arg0: i32) -> (i32, i32) {
    %c0_i32 = arith.constant 0 : i32
    %c0_i32_0 = arith.constant 0 : i32
    %c0_i32_1 = arith.constant 0 : i32
    return %c0_i32, %c0_i32_0 : i32, i32
  }
  func.func @transform_4(%arg0: i32) -> (i32, i32) {
    %c0_i32 = arith.constant 0 : i32
    %c0_i32_0 = arith.constant 0 : i32
    %c0_i32_1 = arith.constant 0 : i32
    return %c0_i32, %c0_i32_0 : i32, i32
  }
  func.func @transform_5(%arg0: i32) -> (i32, i32) {
    %c0_i32 = arith.constant 0 : i32
    %c0_i32_0 = arith.constant 0 : i32
    %c0_i32_1 = arith.constant 0 : i32
    return %c0_i32, %c0_i32_0 : i32, i32
  }
  func.func @transform_6(%arg0: i32) -> (i32, i32) {
    %c0_i32 = arith.constant 0 : i32
    %c0_i32_0 = arith.constant 0 : i32
    %c0_i32_1 = arith.constant 0 : i32
    return %c0_i32, %c0_i32_0 : i32, i32
  }
  func.func @transform_7(%arg0: i32) -> (i32, i32) {
    %c0_i32 = arith.constant 0 : i32
    %c0_i32_0 = arith.constant 0 : i32
    %c0_i32_1 = arith.constant 0 : i32
    return %c0_i32, %c0_i32_0 : i32, i32
  }
  func.func @transform_8(%arg0: i32) -> (i32, i32) {
    %c0_i32 = arith.constant 0 : i32
    %c0_i32_0 = arith.constant 0 : i32
    return %arg0, %c0_i32 : i32, i32
  }
}

</mosaic_0001>

<llo_original>
// kernel: tpu_custom_call.1
$region0: #{tpu_custom_call.1}
  #allocation0 [shape = 'u32[]', space=smem, size = 0x4, offset = 0x4, fixed_abs, tag = 'smem constant byte address 0x4 - core index']
  #allocation1 [shape = 'u32[144,128]{1,0:T(1,128)}', space=vmem, size = 0x12000, scoped, tag = 'internal scratch']
  %s0 = inlined_call_operand.vmem [shape: f32[128,3], index: 0, kind: input, shape index: {}]
  %s1 = inlined_call_operand.vmem [shape: f32[9,128], index: 1, kind: input, shape index: {}]
  %s2 = inlined_call_operand.vmem [shape: f32[1,16], index: 2, kind: input, shape index: {}]
  %s3 = inlined_call_operand.vmem [shape: f32[1,16], index: 3, kind: input, shape index: {}]
  %s4 = inlined_call_operand.vmem [shape: f32[16,128], index: 4, kind: input, shape index: {}]
  %s5 = inlined_call_operand.vmem [shape: f32[1,128], index: 5, kind: input, shape index: {}]
  %s6 = inlined_call_operand.vmem [shape: f32[128,25], index: 6, kind: input, shape index: {}]
  %s7 = inlined_call_operand.vmem [shape: f32[1,25], index: 7, kind: input, shape index: {}]
  %s8 = inlined_call_operand.vmem [shape: f32[128,25], index: 8, kind: output, shape index: {}]
  %s9 = sld [smem:[#allocation0]]
  $region65: #{tpu_custom_call.1} parent=0
    _
  %s11 = ssub.s32 1, %s9
  %s12 = scalar_select 0, %s11, %s9
  loop: start=0, step=1, limit=4
  $region2: #{tpu_custom_call.1} parent=0 // loop_pre_header
    _
  $region3: #{tpu_custom_call.1} parent=0 // loop_header
    %s14 = sphi 0, %s18
    %p15 = scmp.ge.s32.totalorder %s14, 4
    %s24 = sphi 0, %s26
    %s27 = sphi 0, %s24
    %s28 = sphi 0, %s27
    %s44 = sphi 0, %s28
    %s48 = sphi 0, %s48
    %s50 = sphi 0, %s48
    %s51 = sphi 0, %s50
    %s65 = sphi 0, %s51
    %s69 = sphi 0, %s69
    %s71 = sphi 0, %s69
    %s72 = sphi 0, %s71
    %s86 = sphi 0, %s72
    %s90 = sphi 0, %s90
    %s92 = sphi 0, %s90
    %s93 = sphi 0, %s92
    %s107 = sphi 0, %s93
    %s111 = sphi 0, %s111
    %s113 = sphi 0, %s111
    %s114 = sphi 0, %s113
    %s128 = sphi 0, %s114
    %s132 = sphi 0, %s132
    %s134 = sphi 0, %s132
    %s135 = sphi 0, %s134
    %s149 = sphi 0, %s135
    %s153 = sphi 0, %s153
    %s155 = sphi 0, %s153
    %s156 = sphi 0, %s155
    %s170 = sphi 0, %s156
    %s174 = sphi 0, %s174
    %s176 = sphi 0, %s174
    %s177 = sphi 0, %s176
    %s191 = sphi 0, %s177
    %s197 = sphi 0, %s199
    %s200 = sphi 0, %s197
    %s201 = sphi 0, %s200
    %s217 = sphi 0, %s201
  $region4: #{tpu_custom_call.1} parent=0 // loop_header_branch
    %17 = sbr.rel (%p15) target = $region8
  $region5: #{tpu_custom_call.1} parent=0 // loop_body
    %s19 = ssub.s32 %s14, 1
    %s20 = ssub.s32 %s14, 2
    %s21 = sadd.s32 %s14, 1
    %s22 = ssub.s32 %s14, %s21
    %p23 = scmp.eq.s32.totalorder %s22, 0
    %s25 = sadd.s32 %s24, 1
    %s26 = scalar_select %p23, %s24, %s25
    %p29 = pneg %p23
    %p30 = scmp.eq.s32.totalorder %s14, 1
    %p31 = por %p29, %p30
    %p32 = scmp.ne.s32.totalorder %s24, %s27
    %p33 = scmp.eq.s32.totalorder %s14, 0
    %p34 = por %p32, %p33
    %p35 = scmp.ne.s32.totalorder %s24, %s27
    %p36 = scmp.eq.s32.totalorder %s19, 1
    %p37 = por %p35, %p36
    %p38 = scmp.ne.s32.totalorder %s27, %s28
    %p39 = scmp.eq.s32.totalorder %s19, 0
    %p40 = por %p38, %p39
    %p41 = scmp.ne.s32.totalorder %s27, %s28
    %p42 = scmp.eq.s32.totalorder %s20, 1
    %p43 = por %p41, %p42
    %p45 = scmp.ne.s32.totalorder %s28, %s44
    %p46 = scmp.eq.s32.totalorder %s20, 0
    %p47 = por %p45, %p46
    %s49 = sadd.s32 %s48, 1
    %p52 = scmp.eq.s32.totalorder %s14, 1
    %p53 = scmp.ne.s32.totalorder %s48, %s50
    %p54 = scmp.eq.s32.totalorder %s14, 0
    %p55 = por %p53, %p54
    %p56 = scmp.ne.s32.totalorder %s48, %s50
    %p57 = scmp.eq.s32.totalorder %s19, 1
    %p58 = por %p56, %p57
    %p59 = scmp.ne.s32.totalorder %s50, %s51
    %p60 = scmp.eq.s32.totalorder %s19, 0
    %p61 = por %p59, %p60
    %p62 = scmp.ne.s32.totalorder %s50, %s51
    %p63 = scmp.eq.s32.totalorder %s20, 1
    %p64 = por %p62, %p63
    %p66 = scmp.ne.s32.totalorder %s51, %s65
    %p67 = scmp.eq.s32.totalorder %s20, 0
    %p68 = por %p66, %p67
    %s70 = sadd.s32 %s69, 1
    %p73 = scmp.eq.s32.totalorder %s14, 1
    %p74 = scmp.ne.s32.totalorder %s69, %s71
    %p75 = scmp.eq.s32.totalorder %s14, 0
    %p76 = por %p74, %p75
    %p77 = scmp.ne.s32.totalorder %s69, %s71
    %p78 = scmp.eq.s32.totalorder %s19, 1
    %p79 = por %p77, %p78
    %p80 = scmp.ne.s32.totalorder %s71, %s72
    %p81 = scmp.eq.s32.totalorder %s19, 0
    %p82 = por %p80, %p81
    %p83 = scmp.ne.s32.totalorder %s71, %s72
    %p84 = scmp.eq.s32.totalorder %s20, 1
    %p85 = por %p83, %p84
    %p87 = scmp.ne.s32.totalorder %s72, %s86
    %p88 = scmp.eq.s32.totalorder %s20, 0
    %p89 = por %p87, %p88
    %s91 = sadd.s32 %s90, 1
    %p94 = scmp.eq.s32.totalorder %s14, 1
    %p95 = scmp.ne.s32.totalorder %s90, %s92
    %p96 = scmp.eq.s32.totalorder %s14, 0
    %p97 = por %p95, %p96
    %p98 = scmp.ne.s32.totalorder %s90, %s92
    %p99 = scmp.eq.s32.totalorder %s19, 1
    %p100 = por %p98, %p99
    %p101 = scmp.ne.s32.totalorder %s92, %s93
    %p102 = scmp.eq.s32.totalorder %s19, 0
    %p103 = por %p101, %p102
    %p104 = scmp.ne.s32.totalorder %s92, %s93
    %p105 = scmp.eq.s32.totalorder %s20, 1
    %p106 = por %p104, %p105
    %p108 = scmp.ne.s32.totalorder %s93, %s107
    %p109 = scmp.eq.s32.totalorder %s20, 0
    %p110 = por %p108, %p109
    %s112 = sadd.s32 %s111, 1
    %p115 = scmp.eq.s32.totalorder %s14, 1
    %p116 = scmp.ne.s32.totalorder %s111, %s113
    %p117 = scmp.eq.s32.totalorder %s14, 0
    %p118 = por %p116, %p117
    %p119 = scmp.ne.s32.totalorder %s111, %s113
    %p120 = scmp.eq.s32.totalorder %s19, 1
    %p121 = por %p119, %p120
    %p122 = scmp.ne.s32.totalorder %s113, %s114
    %p123 = scmp.eq.s32.totalorder %s19, 0
    %p124 = por %p122, %p123
    %p125 = scmp.ne.s32.totalorder %s113, %s114
    %p126 = scmp.eq.s32.totalorder %s20, 1
    %p127 = por %p125, %p126
    %p129 = scmp.ne.s32.totalorder %s114, %s128
    %p130 = scmp.eq.s32.totalorder %s20, 0
    %p131 = por %p129, %p130
    %s133 = sadd.s32 %s132, 1
    %p136 = scmp.eq.s32.totalorder %s14, 1
    %p137 = scmp.ne.s32.totalorder %s132, %s134
    %p138 = scmp.eq.s32.totalorder %s14, 0
    %p139 = por %p137, %p138
    %p140 = scmp.ne.s32.totalorder %s132, %s134
    %p141 = scmp.eq.s32.totalorder %s19, 1
    %p142 = por %p140, %p141
    %p143 = scmp.ne.s32.totalorder %s134, %s135
    %p144 = scmp.eq.s32.totalorder %s19, 0
    %p145 = por %p143, %p144
    %p146 = scmp.ne.s32.totalorder %s134, %s135
    %p147 = scmp.eq.s32.totalorder %s20, 1
    %p148 = por %p146, %p147
    %p150 = scmp.ne.s32.totalorder %s135, %s149
    %p151 = scmp.eq.s32.totalorder %s20, 0
    %p152 = por %p150, %p151
    %s154 = sadd.s32 %s153, 1
    %p157 = scmp.eq.s32.totalorder %s14, 1
    %p158 = scmp.ne.s32.totalorder %s153, %s155
    %p159 = scmp.eq.s32.totalorder %s14, 0
    %p160 = por %p158, %p159
    %p161 = scmp.ne.s32.totalorder %s153, %s155
    %p162 = scmp.eq.s32.totalorder %s19, 1
    %p163 = por %p161, %p162
    %p164 = scmp.ne.s32.totalorder %s155, %s156
    %p165 = scmp.eq.s32.totalorder %s19, 0
    %p166 = por %p164, %p165
    %p167 = scmp.ne.s32.totalorder %s155, %s156
    %p168 = scmp.eq.s32.totalorder %s20, 1
    %p169 = por %p167, %p168
    %p171 = scmp.ne.s32.totalorder %s156, %s170
    %p172 = scmp.eq.s32.totalorder %s20, 0
    %p173 = por %p171, %p172
    %s175 = sadd.s32 %s174, 1
    %p178 = scmp.eq.s32.totalorder %s14, 1
    %p179 = scmp.ne.s32.totalorder %s174, %s176
    %p180 = scmp.eq.s32.totalorder %s14, 0
    %p181 = por %p179, %p180
    %p182 = scmp.ne.s32.totalorder %s174, %s176
    %p183 = scmp.eq.s32.totalorder %s19, 1
    %p184 = por %p182, %p183
    %p185 = scmp.ne.s32.totalorder %s176, %s177
    %p186 = scmp.eq.s32.totalorder %s19, 0
    %p187 = por %p185, %p186
    %p188 = scmp.ne.s32.totalorder %s176, %s177
    %p189 = scmp.eq.s32.totalorder %s20, 1
    %p190 = por %p188, %p189
    %p192 = scmp.ne.s32.totalorder %s177, %s191
    %p193 = scmp.eq.s32.totalorder %s20, 0
    %p194 = por %p192, %p193
    %s195 = ssub.s32 %s14, %s21
    %p196 = scmp.eq.s32.totalorder %s195, 0
    %s198 = sadd.s32 %s197, 1
    %s199 = scalar_select %p196, %s197, %s198
    %p202 = pneg %p196
    %p203 = scmp.eq.s32.totalorder %s14, 1
    %p204 = por %p202, %p203
    %p205 = scmp.ne.s32.totalorder %s197, %s200
    %p206 = scmp.eq.s32.totalorder %s14, 0
    %p207 = por %p205, %p206
    %p208 = scmp.ne.s32.totalorder %s197, %s200
    %p209 = scmp.eq.s32.totalorder %s19, 1
    %p210 = por %p208, %p209
    %p211 = scmp.ne.s32.totalorder %s200, %s201
    %p212 = scmp.eq.s32.totalorder %s19, 0
    %p213 = por %p211, %p212
    %p214 = scmp.ne.s32.totalorder %s200, %s201
    %p215 = scmp.eq.s32.totalorder %s20, 1
    %p216 = por %p214, %p215
    %p218 = scmp.ne.s32.totalorder %s201, %s217
    %p219 = scmp.eq.s32.totalorder %s20, 0
    %p220 = por %p218, %p219
    %p221 = scmp.le.s32.totalorder 1, %s14
    %p222 = scmp.lt.s32.totalorder %s14, 3
    %p223 = pnand %p221, %p222
    %p224 = pneg %p223
    // Predicated region
    $region9: #{tpu_custom_call.1} parent=5 // pred_check
      _
    $region10: #{tpu_custom_call.1} parent=5 // pred_check_branch
      %226 = sbr.rel (%p223) target = $region12
    $region11: #{tpu_custom_call.1} parent=5 // pred_region
      %s227 = ssub.s32 %s14, 1
      // Predicated region
      $region13: #{tpu_custom_call.1} parent=11 // pred_check
        %p228 = pneg %p61
      $region14: #{tpu_custom_call.1} parent=11 // pred_check_branch
        %230 = sbr.rel (%p228) target = $region16
      $region15: #{tpu_custom_call.1} parent=11 // pred_region
        _
      $region16: #{tpu_custom_call.1} parent=11 // pred_fallthru
        _
      // Predicated region
      $region17: #{tpu_custom_call.1} parent=11 // pred_check
        %p231 = pneg %p82
      $region18: #{tpu_custom_call.1} parent=11 // pred_check_branch
        %233 = sbr.rel (%p231) target = $region20
      $region19: #{tpu_custom_call.1} parent=11 // pred_region
        _
      $region20: #{tpu_custom_call.1} parent=11 // pred_fallthru
        _
      // Predicated region
      $region21: #{tpu_custom_call.1} parent=11 // pred_check
        %p234 = pneg %p103
      $region22: #{tpu_custom_call.1} parent=11 // pred_check_branch
        %236 = sbr.rel (%p234) target = $region24
      $region23: #{tpu_custom_call.1} parent=11 // pred_region
        _
      $region24: #{tpu_custom_call.1} parent=11 // pred_fallthru
        _
      // Predicated region
      $region25: #{tpu_custom_call.1} parent=11 // pred_check
        %p237 = pneg %p124
      $region26: #{tpu_custom_call.1} parent=11 // pred_check_branch
        %239 = sbr.rel (%p237) target = $region28
      $region27: #{tpu_custom_call.1} parent=11 // pred_region
        _
      $region28: #{tpu_custom_call.1} parent=11 // pred_fallthru
        _
      // Predicated region
      $region29: #{tpu_custom_call.1} parent=11 // pred_check
        %p240 = pneg %p145
      $region30: #{tpu_custom_call.1} parent=11 // pred_check_branch
        %242 = sbr.rel (%p240) target = $region32
      $region31: #{tpu_custom_call.1} parent=11 // pred_region
        _
      $region32: #{tpu_custom_call.1} parent=11 // pred_fallthru
        _
      // Predicated region
      $region33: #{tpu_custom_call.1} parent=11 // pred_check
        %p243 = pneg %p166
      $region34: #{tpu_custom_call.1} parent=11 // pred_check_branch
        %245 = sbr.rel (%p243) target = $region36
      $region35: #{tpu_custom_call.1} parent=11 // pred_region
        _
      $region36: #{tpu_custom_call.1} parent=11 // pred_fallthru
        _
      // Predicated region
      $region37: #{tpu_custom_call.1} parent=11 // pred_check
        %p246 = pneg %p187
      $region38: #{tpu_custom_call.1} parent=11 // pred_check_branch
        %248 = sbr.rel (%p246) target = $region40
      $region39: #{tpu_custom_call.1} parent=11 // pred_region
        _
      $region40: #{tpu_custom_call.1} parent=11 // pred_fallthru
        _
    $region12: #{tpu_custom_call.1} parent=5 // pred_fallthru
      _
    %p249 = scmp.lt.s32.totalorder %s14, 2
    // Predicated region
    $region41: #{tpu_custom_call.1} parent=5 // pred_check
      %p250 = pneg %p249
    $region42: #{tpu_custom_call.1} parent=5 // pred_check_branch
      %252 = sbr.rel (%p250) target = $region44
    $region43: #{tpu_custom_call.1} parent=5 // pred_region
      // Predicated region
      $region45: #{tpu_custom_call.1} parent=43 // pred_check
        %p253 = pneg %p34
      $region46: #{tpu_custom_call.1} parent=43 // pred_check_branch
        %255 = sbr.rel (%p253) target = $region48
      $region47: #{tpu_custom_call.1} parent=43 // pred_region
        %s256 = smul.u32 8, %s14
        %p257 = scmp.lt.s32.totalorder %s256, 15
        %s258 = scalar_select %p257, %s256, 15
        %s259 = smul.addr %s258, 8
        %s260 = scalar_lea.vmem %s0, %s259
        %s261 = smul.u32 8, %s14
      $region48: #{tpu_custom_call.1} parent=43 // pred_fallthru
        _
    $region44: #{tpu_custom_call.1} parent=5 // pred_fallthru
      _
    %p262 = scmp.le.s32.totalorder 1, %s14
    %p263 = scmp.lt.s32.totalorder %s14, 3
    %p264 = pnand %p262, %p263
    %p265 = pneg %p264
    // Predicated region
    $region49: #{tpu_custom_call.1} parent=5 // pred_check
      _
    $region50: #{tpu_custom_call.1} parent=5 // pred_check_branch
      %267 = sbr.rel (%p264) target = $region52
    $region51: #{tpu_custom_call.1} parent=5 // pred_region
      %s268 = ssub.s32 %s14, 1
      %s269 = smul.u32 8, %s19
      %p270 = scmp.lt.s32.totalorder %s269, 15
      %s271 = scalar_select %p270, %s269, 15
      %s272 = smul.addr %s271, 8
      %s273 = scalar_lea.vmem %s0, %s272
      %p274 = pneg %p40
      %p275 = pneg %p37
      %p276 = pneg %p61
      %p277 = pneg %p58
      %p278 = pneg %p82
      %p279 = pneg %p79
      %p280 = pneg %p103
      %p281 = pneg %p100
      %p282 = pneg %p124
      %p283 = pneg %p121
      %p284 = pneg %p145
      %p285 = pneg %p142
      %p286 = pneg %p166
      %p287 = pneg %p163
      %p288 = pneg %p187
      %p289 = pneg %p184
      %p290 = pneg %p213
      %p291 = pneg %p210
      %s292 = smul.u32 8, %s19
      %p293 = scmp.lt.s32.totalorder %s292, 15
      %s294 = scalar_select %p293, %s292, 15
      %s295 = smul.addr %s294, 8
      %s296 = scalar_lea.vmem %s8, %s295
      %s297 = smul.u32 8, %s19
      %p298 = scmp.lt.s32.totalorder %s297, 15
      %s299 = scalar_select %p298, %s297, 15
      %s300 = smul.addr %s299, 8
      %s301 = scalar_lea.vmem %s0, %s300
      %s302 = smul.u32 8, %s19
      %s303 = smul.u32 8, %s19
      %p304 = scmp.lt.s32.totalorder %s303, 15
      %s305 = scalar_select %p304, %s303, 15
      %s306 = smul.addr %s305, 8
      %s307 = scalar_lea.vmem %s8, %s306
      %s308 = smul.u32 8, %s19
      %v309 = vld [vmem:[%s301] sm:$0xff]
      %v310 = vld [vmem:[%s301 + $0x8] sm:$0xff]
      %v311 = vld [vmem:[%s301 + $0x10] sm:$0xff]
      %v312 = vld [vmem:[%s301 + $0x18] sm:$0xff]
      %v313 = vld [vmem:[%s301 + $0x20] sm:$0xff]
      %v314 = vld [vmem:[%s301 + $0x28] sm:$0xff]
      %v315 = vld [vmem:[%s301 + $0x30] sm:$0xff]
      %v316 = vld [vmem:[%s301 + $0x38] sm:$0xff]
      %v317 = vmul.f32 %v309, %v309
      %v318 = vmul.f32 %v310, %v310
      %v319 = vmul.f32 %v311, %v311
      %v320 = vmul.f32 %v312, %v312
      %v321 = vmul.f32 %v313, %v313
      %v322 = vmul.f32 %v314, %v314
      %v323 = vmul.f32 %v315, %v315
      %v324 = vmul.f32 %v316, %v316
      %333 = vrot.lane.b32.xlu0 %v317, 127
      %v334 = vpop.permute.xlu0 %333
      %335 = vrot.lane.b32.xlu0 %v318, 127
      %v336 = vpop.permute.xlu0 %335
      %337 = vrot.lane.b32.xlu0 %v319, 127
      %v338 = vpop.permute.xlu0 %337
      %339 = vrot.lane.b32.xlu0 %v320, 127
      %v340 = vpop.permute.xlu0 %339
      %341 = vrot.lane.b32.xlu0 %v321, 127
      %v342 = vpop.permute.xlu0 %341
      %343 = vrot.lane.b32.xlu0 %v322, 127
      %v344 = vpop.permute.xlu0 %343
      %345 = vrot.lane.b32.xlu0 %v323, 127
      %v346 = vpop.permute.xlu0 %345
      %347 = vrot.lane.b32.xlu0 %v324, 127
      %v348 = vpop.permute.xlu0 %347
      %v357 = vadd.f32 %v317, %v334
      %v358 = vadd.f32 %v318, %v336
      %v359 = vadd.f32 %v319, %v338
      %v360 = vadd.f32 %v320, %v340
      %v361 = vadd.f32 %v321, %v342
      %v362 = vadd.f32 %v322, %v344
      %v363 = vadd.f32 %v323, %v346
      %v364 = vadd.f32 %v324, %v348
      %365 = vrot.lane.b32.xlu0 %v317, 126
      %v366 = vpop.permute.xlu0 %365
      %367 = vrot.lane.b32.xlu0 %v318, 126
      %v368 = vpop.permute.xlu0 %367
      %369 = vrot.lane.b32.xlu0 %v319, 126
      %v370 = vpop.permute.xlu0 %369
      %371 = vrot.lane.b32.xlu0 %v320, 126
      %v372 = vpop.permute.xlu0 %371
      %373 = vrot.lane.b32.xlu0 %v321, 126
      %v374 = vpop.permute.xlu0 %373
      %375 = vrot.lane.b32.xlu0 %v322, 126
      %v376 = vpop.permute.xlu0 %375
      %377 = vrot.lane.b32.xlu0 %v323, 126
      %v378 = vpop.permute.xlu0 %377
      %379 = vrot.lane.b32.xlu0 %v324, 126
      %v380 = vpop.permute.xlu0 %379
      %v389 = vadd.f32 %v357, %v366
      %v390 = vadd.f32 %v358, %v368
      %v391 = vadd.f32 %v359, %v370
      %v392 = vadd.f32 %v360, %v372
      %v393 = vadd.f32 %v361, %v374
      %v394 = vadd.f32 %v362, %v376
      %v395 = vadd.f32 %v363, %v378
      %v396 = vadd.f32 %v364, %v380
      %v397 = vrsqrt.pop %v389
      %v398 = vmul.f32 %v389, %v397
      %vm399 = vcmp.eq.f32.partialorder %v389, inf
      %v400 = vsel %vm399, %v389, %v398
      %vm401 = vcmp.eq.f32.partialorder %v389, 0.0
      %v402 = vand.u32 %v389, 2147483648
      %v403 = vsel %vm401, %v402, %v400
      %v404 = vrsqrt.pop %v390
      %v405 = vmul.f32 %v390, %v404
      %vm406 = vcmp.eq.f32.partialorder %v390, inf
      %v407 = vsel %vm406, %v390, %v405
      %vm408 = vcmp.eq.f32.partialorder %v390, 0.0
      %v409 = vand.u32 %v390, 2147483648
      %v410 = vsel %vm408, %v409, %v407
      %v411 = vrsqrt.pop %v391
      %v412 = vmul.f32 %v391, %v411
      %vm413 = vcmp.eq.f32.partialorder %v391, inf
      %v414 = vsel %vm413, %v391, %v412
      %vm415 = vcmp.eq.f32.partialorder %v391, 0.0
      %v416 = vand.u32 %v391, 2147483648
      %v417 = vsel %vm415, %v416, %v414
      %v418 = vrsqrt.pop %v392
      %v419 = vmul.f32 %v392, %v418
      %vm420 = vcmp.eq.f32.partialorder %v392, inf
      %v421 = vsel %vm420, %v392, %v419
      %vm422 = vcmp.eq.f32.partialorder %v392, 0.0
      %v423 = vand.u32 %v392, 2147483648
      %v424 = vsel %vm422, %v423, %v421
      %v425 = vrsqrt.pop %v393
      %v426 = vmul.f32 %v393, %v425
      %vm427 = vcmp.eq.f32.partialorder %v393, inf
      %v428 = vsel %vm427, %v393, %v426
      %vm429 = vcmp.eq.f32.partialorder %v393, 0.0
      %v430 = vand.u32 %v393, 2147483648
      %v431 = vsel %vm429, %v430, %v428
      %v432 = vrsqrt.pop %v394
      %v433 = vmul.f32 %v394, %v432
      %vm434 = vcmp.eq.f32.partialorder %v394, inf
      %v435 = vsel %vm434, %v394, %v433
      %vm436 = vcmp.eq.f32.partialorder %v394, 0.0
      %v437 = vand.u32 %v394, 2147483648
      %v438 = vsel %vm436, %v437, %v435
      %v439 = vrsqrt.pop %v395
      %v440 = vmul.f32 %v395, %v439
      %vm441 = vcmp.eq.f32.partialorder %v395, inf
      %v442 = vsel %vm441, %v395, %v440
      %vm443 = vcmp.eq.f32.partialorder %v395, 0.0
      %v444 = vand.u32 %v395, 2147483648
      %v445 = vsel %vm443, %v444, %v442
      %v446 = vrsqrt.pop %v396
      %v447 = vmul.f32 %v396, %v446
      %vm448 = vcmp.eq.f32.partialorder %v396, inf
      %v449 = vsel %vm448, %v396, %v447
      %vm450 = vcmp.eq.f32.partialorder %v396, 0.0
      %v451 = vand.u32 %v396, 2147483648
      %v452 = vsel %vm450, %v451, %v449
      %vm453 = vcmp.gt.f32.partialorder %v403, 0.0
      %vm454 = vcmp.gt.f32.partialorder %v410, 0.0
      %vm455 = vcmp.gt.f32.partialorder %v417, 0.0
      %vm456 = vcmp.gt.f32.partialorder %v424, 0.0
      %vm457 = vcmp.gt.f32.partialorder %v431, 0.0
      %vm458 = vcmp.gt.f32.partialorder %v438, 0.0
      %vm459 = vcmp.gt.f32.partialorder %v445, 0.0
      %vm460 = vcmp.gt.f32.partialorder %v452, 0.0
      %v461 = vsel %vm453, %v309, 0.0
      %v462 = vsel %vm454, %v310, 0.0
      %v463 = vsel %vm455, %v311, 0.0
      %v464 = vsel %vm456, %v312, 0.0
      %v465 = vsel %vm457, %v313, 0.0
      %v466 = vsel %vm458, %v314, 0.0
      %v467 = vsel %vm459, %v315, 0.0
      %v468 = vsel %vm460, %v316, 0.0
      %477 = vrot.lane.b32.xlu0 %v309, 127
      %v478 = vpop.permute.xlu0 %477
      %479 = vrot.lane.b32.xlu0 %v310, 127
      %v480 = vpop.permute.xlu0 %479
      %481 = vrot.lane.b32.xlu0 %v311, 127
      %v482 = vpop.permute.xlu0 %481
      %483 = vrot.lane.b32.xlu0 %v312, 127
      %v484 = vpop.permute.xlu0 %483
      %485 = vrot.lane.b32.xlu0 %v313, 127
      %v486 = vpop.permute.xlu0 %485
      %487 = vrot.lane.b32.xlu0 %v314, 127
      %v488 = vpop.permute.xlu0 %487
      %489 = vrot.lane.b32.xlu0 %v315, 127
      %v490 = vpop.permute.xlu0 %489
      %491 = vrot.lane.b32.xlu0 %v316, 127
      %v492 = vpop.permute.xlu0 %491
      %v501 = vsel %vm453, %v478, 0.0
      %v502 = vsel %vm454, %v480, 0.0
      %v503 = vsel %vm455, %v482, 0.0
      %v504 = vsel %vm456, %v484, 0.0
      %v505 = vsel %vm457, %v486, 0.0
      %v506 = vsel %vm458, %v488, 0.0
      %v507 = vsel %vm459, %v490, 0.0
      %v508 = vsel %vm460, %v492, 0.0
      %509 = vrot.lane.b32.xlu0 %v309, 126
      %v510 = vpop.permute.xlu0 %509
      %511 = vrot.lane.b32.xlu0 %v310, 126
      %v512 = vpop.permute.xlu0 %511
      %513 = vrot.lane.b32.xlu0 %v311, 126
      %v514 = vpop.permute.xlu0 %513
      %515 = vrot.lane.b32.xlu0 %v312, 126
      %v516 = vpop.permute.xlu0 %515
      %517 = vrot.lane.b32.xlu0 %v313, 126
      %v518 = vpop.permute.xlu0 %517
      %519 = vrot.lane.b32.xlu0 %v314, 126
      %v520 = vpop.permute.xlu0 %519
      %521 = vrot.lane.b32.xlu0 %v315, 126
      %v522 = vpop.permute.xlu0 %521
      %523 = vrot.lane.b32.xlu0 %v316, 126
      %v524 = vpop.permute.xlu0 %523
      %v533 = vsel %vm453, %v510, 1.0
      %v534 = vsel %vm454, %v512, 1.0
      %v535 = vsel %vm455, %v514, 1.0
      %v536 = vsel %vm456, %v516, 1.0
      %v537 = vsel %vm457, %v518, 1.0
      %v538 = vsel %vm458, %v520, 1.0
      %v539 = vsel %vm459, %v522, 1.0
      %v540 = vsel %vm460, %v524, 1.0
      %v541 = vmul.f32 %v461, %v461
      %v542 = vmul.f32 %v462, %v462
      %v543 = vmul.f32 %v463, %v463
      %v544 = vmul.f32 %v464, %v464
      %v545 = vmul.f32 %v465, %v465
      %v546 = vmul.f32 %v466, %v466
      %v547 = vmul.f32 %v467, %v467
      %v548 = vmul.f32 %v468, %v468
      %v549 = vmul.f32 %v501, %v501
      %v550 = vmul.f32 %v502, %v502
      %v551 = vmul.f32 %v503, %v503
      %v552 = vmul.f32 %v504, %v504
      %v553 = vmul.f32 %v505, %v505
      %v554 = vmul.f32 %v506, %v506
      %v555 = vmul.f32 %v507, %v507
      %v556 = vmul.f32 %v508, %v508
      %v557 = vadd.f32 %v541, %v549
      %v558 = vadd.f32 %v542, %v550
      %v559 = vadd.f32 %v543, %v551
      %v560 = vadd.f32 %v544, %v552
      %v561 = vadd.f32 %v545, %v553
      %v562 = vadd.f32 %v546, %v554
      %v563 = vadd.f32 %v547, %v555
      %v564 = vadd.f32 %v548, %v556
      %v565 = vmul.f32 %v533, %v533
      %v566 = vmul.f32 %v534, %v534
      %v567 = vmul.f32 %v535, %v535
      %v568 = vmul.f32 %v536, %v536
      %v569 = vmul.f32 %v537, %v537
      %v570 = vmul.f32 %v538, %v538
      %v571 = vmul.f32 %v539, %v539
      %v572 = vmul.f32 %v540, %v540
      %v573 = vadd.f32 %v557, %v565
      %v574 = vadd.f32 %v558, %v566
      %v575 = vadd.f32 %v559, %v567
      %v576 = vadd.f32 %v560, %v568
      %v577 = vadd.f32 %v561, %v569
      %v578 = vadd.f32 %v562, %v570
      %v579 = vadd.f32 %v563, %v571
      %v580 = vadd.f32 %v564, %v572
      %v581 = vrsqrt.pop %v573
      %v582 = vmul.f32 %v573, %v581
      %vm583 = vcmp.eq.f32.partialorder %v573, inf
      %v584 = vsel %vm583, %v573, %v582
      %vm585 = vcmp.eq.f32.partialorder %v573, 0.0
      %v586 = vand.u32 %v573, 2147483648
      %v587 = vsel %vm585, %v586, %v584
      %v588 = vrsqrt.pop %v574
      %v589 = vmul.f32 %v574, %v588
      %vm590 = vcmp.eq.f32.partialorder %v574, inf
      %v591 = vsel %vm590, %v574, %v589
      %vm592 = vcmp.eq.f32.partialorder %v574, 0.0
      %v593 = vand.u32 %v574, 2147483648
      %v594 = vsel %vm592, %v593, %v591
      %v595 = vrsqrt.pop %v575
      %v596 = vmul.f32 %v575, %v595
      %vm597 = vcmp.eq.f32.partialorder %v575, inf
      %v598 = vsel %vm597, %v575, %v596
      %vm599 = vcmp.eq.f32.partialorder %v575, 0.0
      %v600 = vand.u32 %v575, 2147483648
      %v601 = vsel %vm599, %v600, %v598
      %v602 = vrsqrt.pop %v576
      %v603 = vmul.f32 %v576, %v602
      %vm604 = vcmp.eq.f32.partialorder %v576, inf
      %v605 = vsel %vm604, %v576, %v603
      %vm606 = vcmp.eq.f32.partialorder %v576, 0.0
      %v607 = vand.u32 %v576, 2147483648
      %v608 = vsel %vm606, %v607, %v605
      %v609 = vrsqrt.pop %v577
      %v610 = vmul.f32 %v577, %v609
      %vm611 = vcmp.eq.f32.partialorder %v577, inf
      %v612 = vsel %vm611, %v577, %v610
      %vm613 = vcmp.eq.f32.partialorder %v577, 0.0
      %v614 = vand.u32 %v577, 2147483648
      %v615 = vsel %vm613, %v614, %v612
      %v616 = vrsqrt.pop %v578
      %v617 = vmul.f32 %v578, %v616
      %vm618 = vcmp.eq.f32.partialorder %v578, inf
      %v619 = vsel %vm618, %v578, %v617
      %vm620 = vcmp.eq.f32.partialorder %v578, 0.0
      %v621 = vand.u32 %v578, 2147483648
      %v622 = vsel %vm620, %v621, %v619
      %v623 = vrsqrt.pop %v579
      %v624 = vmul.f32 %v579, %v623
      %vm625 = vcmp.eq.f32.partialorder %v579, inf
      %v626 = vsel %vm625, %v579, %v624
      %vm627 = vcmp.eq.f32.partialorder %v579, 0.0
      %v628 = vand.u32 %v579, 2147483648
      %v629 = vsel %vm627, %v628, %v626
      %v630 = vrsqrt.pop %v580
      %v631 = vmul.f32 %v580, %v630
      %vm632 = vcmp.eq.f32.partialorder %v580, inf
      %v633 = vsel %vm632, %v580, %v631
      %vm634 = vcmp.eq.f32.partialorder %v580, 0.0
      %v635 = vand.u32 %v580, 2147483648
      %v636 = vsel %vm634, %v635, %v633
      %v637 = vrcp.pop %v587
      %v638 = vmul.f32 %v461, %v637
      %v639 = vrcp.pop %v594
      %v640 = vmul.f32 %v462, %v639
      %v641 = vrcp.pop %v601
      %v642 = vmul.f32 %v463, %v641
      %v643 = vrcp.pop %v608
      %v644 = vmul.f32 %v464, %v643
      %v645 = vrcp.pop %v615
      %v646 = vmul.f32 %v465, %v645
      %v647 = vrcp.pop %v622
      %v648 = vmul.f32 %v466, %v647
      %v649 = vrcp.pop %v629
      %v650 = vmul.f32 %v467, %v649
      %v651 = vrcp.pop %v636
      %v652 = vmul.f32 %v468, %v651
      %v653 = vmul.f32 %v501, %v637
      %v654 = vmul.f32 %v502, %v639
      %v655 = vmul.f32 %v503, %v641
      %v656 = vmul.f32 %v504, %v643
      %v657 = vmul.f32 %v505, %v645
      %v658 = vmul.f32 %v506, %v647
      %v659 = vmul.f32 %v507, %v649
      %v660 = vmul.f32 %v508, %v651
      %v661 = vmul.f32 %v533, %v637
      %v662 = vmul.f32 %v534, %v639
      %v663 = vmul.f32 %v535, %v641
      %v664 = vmul.f32 %v536, %v643
      %v665 = vmul.f32 %v537, %v645
      %v666 = vmul.f32 %v538, %v647
      %v667 = vmul.f32 %v539, %v649
      %v668 = vmul.f32 %v540, %v651
      %v669 = vmul.f32 %v653, 0.48860252
      %v670 = vmul.f32 %v654, 0.48860252
      %v671 = vmul.f32 %v655, 0.48860252
      %v672 = vmul.f32 %v656, 0.48860252
      %v673 = vmul.f32 %v657, 0.48860252
      %v674 = vmul.f32 %v658, 0.48860252
      %v675 = vmul.f32 %v659, 0.48860252
      %v676 = vmul.f32 %v660, 0.48860252
      %v677 = vmul.f32 %v661, 0.48860252
      %v678 = vmul.f32 %v662, 0.48860252
      %v679 = vmul.f32 %v663, 0.48860252
      %v680 = vmul.f32 %v664, 0.48860252
      %v681 = vmul.f32 %v665, 0.48860252
      %v682 = vmul.f32 %v666, 0.48860252
      %v683 = vmul.f32 %v667, 0.48860252
      %v684 = vmul.f32 %v668, 0.48860252
      %v685 = vmul.f32 %v638, 0.48860252
      %v686 = vmul.f32 %v640, 0.48860252
      %v687 = vmul.f32 %v642, 0.48860252
      %v688 = vmul.f32 %v644, 0.48860252
      %v689 = vmul.f32 %v646, 0.48860252
      %v690 = vmul.f32 %v648, 0.48860252
      %v691 = vmul.f32 %v650, 0.48860252
      %v692 = vmul.f32 %v652, 0.48860252
      %v693 = vmul.f32 %v638, 1.0925485
      %v694 = vmul.f32 %v640, 1.0925485
      %v695 = vmul.f32 %v642, 1.0925485
      %v696 = vmul.f32 %v644, 1.0925485
      %v697 = vmul.f32 %v646, 1.0925485
      %v698 = vmul.f32 %v648, 1.0925485
      %v699 = vmul.f32 %v650, 1.0925485
      %v700 = vmul.f32 %v652, 1.0925485
      %v701 = vmul.f32 %v693, %v653
      %v702 = vmul.f32 %v694, %v654
      %v703 = vmul.f32 %v695, %v655
      %v704 = vmul.f32 %v696, %v656
      %v705 = vmul.f32 %v697, %v657
      %v706 = vmul.f32 %v698, %v658
      %v707 = vmul.f32 %v699, %v659
      %v708 = vmul.f32 %v700, %v660
      %v709 = vmul.f32 %v653, 1.0925485
      %v710 = vmul.f32 %v654, 1.0925485
      %v711 = vmul.f32 %v655, 1.0925485
      %v712 = vmul.f32 %v656, 1.0925485
      %v713 = vmul.f32 %v657, 1.0925485
      %v714 = vmul.f32 %v658, 1.0925485
      %v715 = vmul.f32 %v659, 1.0925485
      %v716 = vmul.f32 %v660, 1.0925485
      %v717 = vmul.f32 %v709, %v661
      %v718 = vmul.f32 %v710, %v662
      %v719 = vmul.f32 %v711, %v663
      %v720 = vmul.f32 %v712, %v664
      %v721 = vmul.f32 %v713, %v665
      %v722 = vmul.f32 %v714, %v666
      %v723 = vmul.f32 %v715, %v667
      %v724 = vmul.f32 %v716, %v668
      %v725 = vmul.f32 %v661, 3.0
      %v726 = vmul.f32 %v662, 3.0
      %v727 = vmul.f32 %v663, 3.0
      %v728 = vmul.f32 %v664, 3.0
      %v729 = vmul.f32 %v665, 3.0
      %v730 = vmul.f32 %v666, 3.0
      %v731 = vmul.f32 %v667, 3.0
      %v732 = vmul.f32 %v668, 3.0
      %v733 = vmul.f32 %v725, %v661
      %v734 = vmul.f32 %v726, %v662
      %v735 = vmul.f32 %v727, %v663
      %v736 = vmul.f32 %v728, %v664
      %v737 = vmul.f32 %v729, %v665
      %v738 = vmul.f32 %v730, %v666
      %v739 = vmul.f32 %v731, %v667
      %v740 = vmul.f32 %v732, %v668
      %v741 = vsub.f32 %v733, 1.0
      %v742 = vsub.f32 %v734, 1.0
      %v743 = vsub.f32 %v735, 1.0
      %v744 = vsub.f32 %v736, 1.0
      %v745 = vsub.f32 %v737, 1.0
      %v746 = vsub.f32 %v738, 1.0
      %v747 = vsub.f32 %v739, 1.0
      %v748 = vsub.f32 %v740, 1.0
      %v749 = vmul.f32 %v741, 0.31539157
      %v750 = vmul.f32 %v742, 0.31539157
      %v751 = vmul.f32 %v743, 0.31539157
      %v752 = vmul.f32 %v744, 0.31539157
      %v753 = vmul.f32 %v745, 0.31539157
      %v754 = vmul.f32 %v746, 0.31539157
      %v755 = vmul.f32 %v747, 0.31539157
      %v756 = vmul.f32 %v748, 0.31539157
      %v757 = vmul.f32 %v693, %v661
      %v758 = vmul.f32 %v694, %v662
      %v759 = vmul.f32 %v695, %v663
      %v760 = vmul.f32 %v696, %v664
      %v761 = vmul.f32 %v697, %v665
      %v762 = vmul.f32 %v698, %v666
      %v763 = vmul.f32 %v699, %v667
      %v764 = vmul.f32 %v700, %v668
      %v765 = vmul.f32 %v638, %v638
      %v766 = vmul.f32 %v640, %v640
      %v767 = vmul.f32 %v642, %v642
      %v768 = vmul.f32 %v644, %v644
      %v769 = vmul.f32 %v646, %v646
      %v770 = vmul.f32 %v648, %v648
      %v771 = vmul.f32 %v650, %v650
      %v772 = vmul.f32 %v652, %v652
      %v773 = vmul.f32 %v653, %v653
      %v774 = vmul.f32 %v654, %v654
      %v775 = vmul.f32 %v655, %v655
      %v776 = vmul.f32 %v656, %v656
      %v777 = vmul.f32 %v657, %v657
      %v778 = vmul.f32 %v658, %v658
      %v779 = vmul.f32 %v659, %v659
      %v780 = vmul.f32 %v660, %v660
      %v781 = vsub.f32 %v765, %v773
      %v782 = vsub.f32 %v766, %v774
      %v783 = vsub.f32 %v767, %v775
      %v784 = vsub.f32 %v768, %v776
      %v785 = vsub.f32 %v769, %v777
      %v786 = vsub.f32 %v770, %v778
      %v787 = vsub.f32 %v771, %v779
      %v788 = vsub.f32 %v772, %v780
      %v789 = vmul.f32 %v781, 0.54627424
      %v790 = vmul.f32 %v782, 0.54627424
      %v791 = vmul.f32 %v783, 0.54627424
      %v792 = vmul.f32 %v784, 0.54627424
      %v793 = vmul.f32 %v785, 0.54627424
      %v794 = vmul.f32 %v786, 0.54627424
      %v795 = vmul.f32 %v787, 0.54627424
      %v796 = vmul.f32 %v788, 0.54627424
      %v797 = vld [vmem:[%s2] sm:$0x1]
      %799 = vset.pattern.permute.xlu0 0
      %800 = vperm.xlu0 %799, %v403
      %v801 = vpop.permute.xlu0 %800
      %804 = vset.pattern.permute.xlu0 0
      %805 = vperm.xlu0 %804, %v410
      %v806 = vpop.permute.xlu0 %805
      %809 = vset.pattern.permute.xlu0 0
      %810 = vperm.xlu0 %809, %v417
      %v811 = vpop.permute.xlu0 %810
      %814 = vset.pattern.permute.xlu0 0
      %815 = vperm.xlu0 %814, %v424
      %v816 = vpop.permute.xlu0 %815
      %819 = vset.pattern.permute.xlu0 0
      %820 = vperm.xlu0 %819, %v431
      %v821 = vpop.permute.xlu0 %820
      %824 = vset.pattern.permute.xlu0 0
      %825 = vperm.xlu0 %824, %v438
      %v826 = vpop.permute.xlu0 %825
      %829 = vset.pattern.permute.xlu0 0
      %830 = vperm.xlu0 %829, %v445
      %v831 = vpop.permute.xlu0 %830
      %834 = vset.pattern.permute.xlu0 0
      %835 = vperm.xlu0 %834, %v452
      %v836 = vpop.permute.xlu0 %835
      %v839 = vlaneseq
      %v840 = vshrl.u32 %v839, 7
      %v841 = vsub.s32 0, %v840
      %v842 = vrot.slane %v797, %v841
      %v844 = vmul.f32 %v801, %v842
      %v845 = vmul.f32 %v806, %v842
      %v846 = vmul.f32 %v811, %v842
      %v847 = vmul.f32 %v816, %v842
      %v848 = vmul.f32 %v821, %v842
      %v849 = vmul.f32 %v826, %v842
      %v850 = vmul.f32 %v831, %v842
      %v851 = vmul.f32 %v836, %v842
      %v852 = vld [vmem:[%s3] sm:$0x1]
      %v854 = vlaneseq
      %v855 = vshrl.u32 %v854, 7
      %v856 = vsub.s32 0, %v855
      %v857 = vrot.slane %v852, %v856
      %v859 = vadd.f32 %v844, %v857
      %v860 = vadd.f32 %v845, %v857
      %v861 = vadd.f32 %v846, %v857
      %v862 = vadd.f32 %v847, %v857
      %v863 = vadd.f32 %v848, %v857
      %v864 = vadd.f32 %v849, %v857
      %v865 = vadd.f32 %v850, %v857
      %v866 = vadd.f32 %v851, %v857
      %v867 = vtanh.pop %v859
      %v868 = vtanh.pop %v860
      %v869 = vtanh.pop %v861
      %v870 = vtanh.pop %v862
      %v871 = vtanh.pop %v863
      %v872 = vtanh.pop %v864
      %v873 = vtanh.pop %v865
      %v874 = vtanh.pop %v866
      %v875 = vld [vmem:[%s4] sm:$0xff]
      %v876 = vld [vmem:[%s4 + $0x8] sm:$0xff]
      %v877 = vld [vmem:[%s5] sm:$0x1]
      %v879 = vlaneseq
      %v880 = vshrl.u32 %v879, 7
      %v881 = vsub.s32 0, %v880
      %v882 = vrot.slane %v877, %v881
      %vm884 = vcmask 130048
      %v886 = vsel %vm884, %v867, 0
      %v889 = vsel %vm884, %v868, 0
      %v892 = vsel %vm884, %v869, 0
      %v895 = vsel %vm884, %v870, 0
      %v898 = vsel %vm884, %v871, 0
      %v901 = vsel %vm884, %v872, 0
      %v904 = vsel %vm884, %v873, 0
      %v907 = vsel %vm884, %v874, 0
      %909 = vmatprep.subr.mxu0 0.0
      %910 = vmatpush1.msra.mxu0 %v875
      %911 = vmatprep.subr.mxu0 0.0
      %912 = vmatpush1.msra.mxu0 %v876
      %913 = vmatprep.subr.mxu0 0.0
      %914 = vmatpush1.msra.mxu0 0.0
      %915 = vmatprep.subr.mxu0 0.0
      %916 = vmatpush1.msra.mxu0 0.0
      %917 = vmatprep.subr.mxu0 0.0
      %918 = vmatpush1.msra.mxu0 0.0
      %919 = vmatprep.subr.mxu0 0.0
      %920 = vmatpush1.msra.mxu0 0.0
      %921 = vmatprep.subr.mxu0 0.0
      %922 = vmatpush1.msra.mxu0 0.0
      %923 = vmatprep.subr.mxu0 0.0
      %924 = vmatpush1.msra.mxu0 0.0
      %925 = vmatprep.subr.mxu0 0.0
      %926 = vmatpush1.msra.mxu0 0.0
      %927 = vmatprep.subr.mxu0 0.0
      %928 = vmatpush1.msra.mxu0 0.0
      %929 = vmatprep.subr.mxu0 0.0
      %930 = vmatpush1.msra.mxu0 0.0
      %931 = vmatprep.subr.mxu0 0.0
      %932 = vmatpush1.msra.mxu0 0.0
      %933 = vmatprep.subr.mxu0 0.0
      %934 = vmatpush1.msra.mxu0 0.0
      %935 = vmatprep.subr.mxu0 0.0
      %936 = vmatpush1.msra.mxu0 0.0
      %937 = vmatprep.subr.mxu0 0.0
      %938 = vmatpush1.msra.mxu0 0.0
      %939 = vmatprep.subr.mxu0 0.0
      %940 = vmatpush1.msra.mxu0 0.0
      %941 = vmatprep.subr.mxu0 0.0
      %942 = vmatpush1.msra.mxu0 0.0
      %943 = vmatprep.subr.mxu0 0.0
      %944 = vmatpush1.msra.mxu0 0.0
      %945 = vmatprep.subr.mxu0 0.0
      %946 = vmatpush1.msra.mxu0 0.0
      %947 = vmatprep.subr.mxu0 0.0
      %948 = vmatpush1.msra.mxu0 0.0
      %949 = vmatprep.subr.mxu0 0.0
      %950 = vmatpush1.msra.mxu0 0.0
      %951 = vmatprep.subr.mxu0 0.0
      %952 = vmatpush1.msra.mxu0 0.0
      %953 = vmatprep.subr.mxu0 0.0
      %954 = vmatpush1.msra.mxu0 0.0
      %955 = vmatprep.subr.mxu0 0.0
      %956 = vmatpush1.msra.mxu0 0.0
      %957 = vmatprep.subr.mxu0 0.0
      %958 = vmatpush1.msra.mxu0 0.0
      %959 = vmatprep.subr.mxu0 0.0
      %960 = vmatpush1.msra.mxu0 0.0
      %961 = vmatprep.subr.mxu0 0.0
      %962 = vmatpush1.msra.mxu0 0.0
      %963 = vmatprep.subr.mxu0 0.0
      %964 = vmatpush1.msra.mxu0 0.0
      %965 = vmatprep.subr.mxu0 0.0
      %966 = vmatpush1.msra.mxu0 0.0
      %967 = vmatprep.subr.mxu0 0.0
      %968 = vmatpush1.msra.mxu0 0.0
      %969 = vmatprep.subr.mxu0 0.0
      %970 = vmatpush1.msra.mxu0 0.0
      %971 = vmatprep.subr.mxu0 0.0
      %972 = vmatpush1.msra.mxu0 0.0
      %973 = vmatprep.mubr.f32.mxu0 0.0
      %974 = vmatmul.mubr.f32.gmra.mrb[0].mxu0 %v886
      %v975 = vpop.f32.mrb[0].mxu0
      %v976 = vadd.f32 %v882, %v975
      %v977 = vpop.f32.mrb[0].mxu0
      %978 = vmatprep.mubr.f32.mxu0 0.0
      %979 = vmatmul.mubr.f32.gmra.mrb[0].mxu0 %v889
      %v980 = vpop.f32.mrb[0].mxu0
      %v981 = vadd.f32 %v882, %v980
      %v982 = vpop.f32.mrb[0].mxu0
      %983 = vmatprep.mubr.f32.mxu0 0.0
      %984 = vmatmul.mubr.f32.gmra.mrb[0].mxu0 %v892
      %v985 = vpop.f32.mrb[0].mxu0
      %v986 = vadd.f32 %v882, %v985
      %v987 = vpop.f32.mrb[0].mxu0
      %988 = vmatprep.mubr.f32.mxu0 0.0
      %989 = vmatmul.mubr.f32.gmra.mrb[0].mxu0 %v895
      %v990 = vpop.f32.mrb[0].mxu0
      %v991 = vadd.f32 %v882, %v990
      %v992 = vpop.f32.mrb[0].mxu0
      %993 = vmatprep.mubr.f32.mxu0 0.0
      %994 = vmatmul.mubr.f32.gmra.mrb[0].mxu0 %v898
      %v995 = vpop.f32.mrb[0].mxu0
      %v996 = vadd.f32 %v882, %v995
      %v997 = vpop.f32.mrb[0].mxu0
      %998 = vmatprep.mubr.f32.mxu0 0.0
      %999 = vmatmul.mubr.f32.gmra.mrb[0].mxu0 %v901
      %v1000 = vpop.f32.mrb[0].mxu0
      %v1001 = vadd.f32 %v882, %v1000
      %v1002 = vpop.f32.mrb[0].mxu0
      %1003 = vmatprep.mubr.f32.mxu0 0.0
      %1004 = vmatmul.mubr.f32.gmra.mrb[0].mxu0 %v904
      %v1005 = vpop.f32.mrb[0].mxu0
      %v1006 = vadd.f32 %v882, %v1005
      %v1007 = vpop.f32.mrb[0].mxu0
      %1008 = vmatprep.mubr.f32.mxu0 0.0
      %1009 = vmatmul.mubr.f32.gmra.mrb[0].mxu0 %v907
      %v1010 = vpop.f32.mrb[0].mxu0
      %v1011 = vadd.f32 %v882, %v1010
      %v1012 = vpop.f32.mrb[0].mxu0
      %1013 = vdwg.mxu0
      %v1014 = vld [vmem:[%s1] sm:$0x1]
      %v1015 = vlaneseq
      %v1016 = vshrl.u32 %v1015, 7
      %v1017 = vsub.s32 0, %v1016
      %v1018 = vrot.slane %v1014, %v1017
      %v1019 = vmul.f32 %v1018, 0.2820948
      %v1020 = vld [vmem:[%s1 + $0x1] sm:$0x1]
      %1022 = vset.pattern.permute.xlu0 0
      %1023 = vperm.xlu0 %1022, %v669
      %v1024 = vpop.permute.xlu0 %1023
      %1027 = vset.pattern.permute.xlu0 0
      %1028 = vperm.xlu0 %1027, %v670
      %v1029 = vpop.permute.xlu0 %1028
      %1032 = vset.pattern.permute.xlu0 0
      %1033 = vperm.xlu0 %1032, %v671
      %v1034 = vpop.permute.xlu0 %1033
      %1037 = vset.pattern.permute.xlu0 0
      %1038 = vperm.xlu0 %1037, %v672
      %v1039 = vpop.permute.xlu0 %1038
      %1042 = vset.pattern.permute.xlu0 0
      %1043 = vperm.xlu0 %1042, %v673
      %v1044 = vpop.permute.xlu0 %1043
      %1047 = vset.pattern.permute.xlu0 0
      %1048 = vperm.xlu0 %1047, %v674
      %v1049 = vpop.permute.xlu0 %1048
      %1052 = vset.pattern.permute.xlu0 0
      %1053 = vperm.xlu0 %1052, %v675
      %v1054 = vpop.permute.xlu0 %1053
      %1057 = vset.pattern.permute.xlu0 0
      %1058 = vperm.xlu0 %1057, %v676
      %v1059 = vpop.permute.xlu0 %1058
      %v1061 = vlaneseq
      %v1062 = vshrl.u32 %v1061, 7
      %v1063 = vsub.s32 0, %v1062
      %v1064 = vrot.slane %v1020, %v1063
      %v1065 = vmul.f32 %v1024, %v1064
      %v1066 = vmul.f32 %v1029, %v1064
      %v1067 = vmul.f32 %v1034, %v1064
      %v1068 = vmul.f32 %v1039, %v1064
      %v1069 = vmul.f32 %v1044, %v1064
      %v1070 = vmul.f32 %v1049, %v1064
      %v1071 = vmul.f32 %v1054, %v1064
      %v1072 = vmul.f32 %v1059, %v1064
      %v1073 = vadd.f32 %v1019, %v1065
      %v1074 = vadd.f32 %v1019, %v1066
      %v1075 = vadd.f32 %v1019, %v1067
      %v1076 = vadd.f32 %v1019, %v1068
      %v1077 = vadd.f32 %v1019, %v1069
      %v1078 = vadd.f32 %v1019, %v1070
      %v1079 = vadd.f32 %v1019, %v1071
      %v1080 = vadd.f32 %v1019, %v1072
      %v1081 = vld [vmem:[%s1 + $0x2] sm:$0x1]
      %1083 = vset.pattern.permute.xlu0 0
      %1084 = vperm.xlu0 %1083, %v677
      %v1085 = vpop.permute.xlu0 %1084
      %1088 = vset.pattern.permute.xlu0 0
      %1089 = vperm.xlu0 %1088, %v678
      %v1090 = vpop.permute.xlu0 %1089
      %1093 = vset.pattern.permute.xlu0 0
      %1094 = vperm.xlu0 %1093, %v679
      %v1095 = vpop.permute.xlu0 %1094
      %1098 = vset.pattern.permute.xlu0 0
      %1099 = vperm.xlu0 %1098, %v680
      %v1100 = vpop.permute.xlu0 %1099
      %1103 = vset.pattern.permute.xlu0 0
      %1104 = vperm.xlu0 %1103, %v681
      %v1105 = vpop.permute.xlu0 %1104
      %1108 = vset.pattern.permute.xlu0 0
      %1109 = vperm.xlu0 %1108, %v682
      %v1110 = vpop.permute.xlu0 %1109
      %1113 = vset.pattern.permute.xlu0 0
      %1114 = vperm.xlu0 %1113, %v683
      %v1115 = vpop.permute.xlu0 %1114
      %1118 = vset.pattern.permute.xlu0 0
      %1119 = vperm.xlu0 %1118, %v684
      %v1120 = vpop.permute.xlu0 %1119
      %v1122 = vlaneseq
      %v1123 = vshrl.u32 %v1122, 7
      %v1124 = vsub.s32 0, %v1123
      %v1125 = vrot.slane %v1081, %v1124
      %v1126 = vmul.f32 %v1085, %v1125
      %v1127 = vmul.f32 %v1090, %v1125
      %v1128 = vmul.f32 %v1095, %v1125
      %v1129 = vmul.f32 %v1100, %v1125
      %v1130 = vmul.f32 %v1105, %v1125
      %v1131 = vmul.f32 %v1110, %v1125
      %v1132 = vmul.f32 %v1115, %v1125
      %v1133 = vmul.f32 %v1120, %v1125
      %v1134 = vadd.f32 %v1073, %v1126
      %v1135 = vadd.f32 %v1074, %v1127
      %v1136 = vadd.f32 %v1075, %v1128
      %v1137 = vadd.f32 %v1076, %v1129
      %v1138 = vadd.f32 %v1077, %v1130
      %v1139 = vadd.f32 %v1078, %v1131
      %v1140 = vadd.f32 %v1079, %v1132
      %v1141 = vadd.f32 %v1080, %v1133
      %v1142 = vld [vmem:[%s1 + $0x3] sm:$0x1]
      %1144 = vset.pattern.permute.xlu0 0
      %1145 = vperm.xlu0 %1144, %v685
      %v1146 = vpop.permute.xlu0 %1145
      %1149 = vset.pattern.permute.xlu0 0
      %1150 = vperm.xlu0 %1149, %v686
      %v1151 = vpop.permute.xlu0 %1150
      %1154 = vset.pattern.permute.xlu0 0
      %1155 = vperm.xlu0 %1154, %v687
      %v1156 = vpop.permute.xlu0 %1155
      %1159 = vset.pattern.permute.xlu0 0
      %1160 = vperm.xlu0 %1159, %v688
      %v1161 = vpop.permute.xlu0 %1160
      %1164 = vset.pattern.permute.xlu0 0
      %1165 = vperm.xlu0 %1164, %v689
      %v1166 = vpop.permute.xlu0 %1165
      %1169 = vset.pattern.permute.xlu0 0
      %1170 = vperm.xlu0 %1169, %v690
      %v1171 = vpop.permute.xlu0 %1170
      %1174 = vset.pattern.permute.xlu0 0
      %1175 = vperm.xlu0 %1174, %v691
      %v1176 = vpop.permute.xlu0 %1175
      %1179 = vset.pattern.permute.xlu0 0
      %1180 = vperm.xlu0 %1179, %v692
      %v1181 = vpop.permute.xlu0 %1180
      %v1183 = vlaneseq
      %v1184 = vshrl.u32 %v1183, 7
      %v1185 = vsub.s32 0, %v1184
      %v1186 = vrot.slane %v1142, %v1185
      %v1187 = vmul.f32 %v1146, %v1186
      %v1188 = vmul.f32 %v1151, %v1186
      %v1189 = vmul.f32 %v1156, %v1186
      %v1190 = vmul.f32 %v1161, %v1186
      %v1191 = vmul.f32 %v1166, %v1186
      %v1192 = vmul.f32 %v1171, %v1186
      %v1193 = vmul.f32 %v1176, %v1186
      %v1194 = vmul.f32 %v1181, %v1186
      %v1195 = vadd.f32 %v1134, %v1187
      %v1196 = vadd.f32 %v1135, %v1188
      %v1197 = vadd.f32 %v1136, %v1189
      %v1198 = vadd.f32 %v1137, %v1190
      %v1199 = vadd.f32 %v1138, %v1191
      %v1200 = vadd.f32 %v1139, %v1192
      %v1201 = vadd.f32 %v1140, %v1193
      %v1202 = vadd.f32 %v1141, %v1194
      %v1203 = vld [vmem:[%s1 + $0x4] sm:$0x1]
      %1205 = vset.pattern.permute.xlu0 0
      %1206 = vperm.xlu0 %1205, %v701
      %v1207 = vpop.permute.xlu0 %1206
      %1210 = vset.pattern.permute.xlu0 0
      %1211 = vperm.xlu0 %1210, %v702
      %v1212 = vpop.permute.xlu0 %1211
      %1215 = vset.pattern.permute.xlu0 0
      %1216 = vperm.xlu0 %1215, %v703
      %v1217 = vpop.permute.xlu0 %1216
      %1220 = vset.pattern.permute.xlu0 0
      %1221 = vperm.xlu0 %1220, %v704
      %v1222 = vpop.permute.xlu0 %1221
      %1225 = vset.pattern.permute.xlu0 0
      %1226 = vperm.xlu0 %1225, %v705
      %v1227 = vpop.permute.xlu0 %1226
      %1230 = vset.pattern.permute.xlu0 0
      %1231 = vperm.xlu0 %1230, %v706
      %v1232 = vpop.permute.xlu0 %1231
      %1235 = vset.pattern.permute.xlu0 0
      %1236 = vperm.xlu0 %1235, %v707
      %v1237 = vpop.permute.xlu0 %1236
      %1240 = vset.pattern.permute.xlu0 0
      %1241 = vperm.xlu0 %1240, %v708
      %v1242 = vpop.permute.xlu0 %1241
      %v1244 = vlaneseq
      %v1245 = vshrl.u32 %v1244, 7
      %v1246 = vsub.s32 0, %v1245
      %v1247 = vrot.slane %v1203, %v1246
      %v1248 = vmul.f32 %v1207, %v1247
      %v1249 = vmul.f32 %v1212, %v1247
      %v1250 = vmul.f32 %v1217, %v1247
      %v1251 = vmul.f32 %v1222, %v1247
      %v1252 = vmul.f32 %v1227, %v1247
      %v1253 = vmul.f32 %v1232, %v1247
      %v1254 = vmul.f32 %v1237, %v1247
      %v1255 = vmul.f32 %v1242, %v1247
      %v1256 = vadd.f32 %v1195, %v1248
      %v1257 = vadd.f32 %v1196, %v1249
      %v1258 = vadd.f32 %v1197, %v1250
      %v1259 = vadd.f32 %v1198, %v1251
      %v1260 = vadd.f32 %v1199, %v1252
      %v1261 = vadd.f32 %v1200, %v1253
      %v1262 = vadd.f32 %v1201, %v1254
      %v1263 = vadd.f32 %v1202, %v1255
      %v1264 = vld [vmem:[%s1 + $0x5] sm:$0x1]
      %1266 = vset.pattern.permute.xlu0 0
      %1267 = vperm.xlu0 %1266, %v717
      %v1268 = vpop.permute.xlu0 %1267
      %1271 = vset.pattern.permute.xlu0 0
      %1272 = vperm.xlu0 %1271, %v718
      %v1273 = vpop.permute.xlu0 %1272
      %1276 = vset.pattern.permute.xlu0 0
      %1277 = vperm.xlu0 %1276, %v719
      %v1278 = vpop.permute.xlu0 %1277
      %1281 = vset.pattern.permute.xlu0 0
      %1282 = vperm.xlu0 %1281, %v720
      %v1283 = vpop.permute.xlu0 %1282
      %1286 = vset.pattern.permute.xlu0 0
      %1287 = vperm.xlu0 %1286, %v721
      %v1288 = vpop.permute.xlu0 %1287
      %1291 = vset.pattern.permute.xlu0 0
      %1292 = vperm.xlu0 %1291, %v722
      %v1293 = vpop.permute.xlu0 %1292
      %1296 = vset.pattern.permute.xlu0 0
      %1297 = vperm.xlu0 %1296, %v723
      %v1298 = vpop.permute.xlu0 %1297
      %1301 = vset.pattern.permute.xlu0 0
      %1302 = vperm.xlu0 %1301, %v724
      %v1303 = vpop.permute.xlu0 %1302
      %v1305 = vlaneseq
      %v1306 = vshrl.u32 %v1305, 7
      %v1307 = vsub.s32 0, %v1306
      %v1308 = vrot.slane %v1264, %v1307
      %v1309 = vmul.f32 %v1268, %v1308
      %v1310 = vmul.f32 %v1273, %v1308
      %v1311 = vmul.f32 %v1278, %v1308
      %v1312 = vmul.f32 %v1283, %v1308
      %v1313 = vmul.f32 %v1288, %v1308
      %v1314 = vmul.f32 %v1293, %v1308
      %v1315 = vmul.f32 %v1298, %v1308
      %v1316 = vmul.f32 %v1303, %v1308
      %v1317 = vadd.f32 %v1256, %v1309
      %v1318 = vadd.f32 %v1257, %v1310
      %v1319 = vadd.f32 %v1258, %v1311
      %v1320 = vadd.f32 %v1259, %v1312
      %v1321 = vadd.f32 %v1260, %v1313
      %v1322 = vadd.f32 %v1261, %v1314
      %v1323 = vadd.f32 %v1262, %v1315
      %v1324 = vadd.f32 %v1263, %v1316
      %v1325 = vld [vmem:[%s1 + $0x6] sm:$0x1]
      %1327 = vset.pattern.permute.xlu0 0
      %1328 = vperm.xlu0 %1327, %v749
      %v1329 = vpop.permute.xlu0 %1328
      %1332 = vset.pattern.permute.xlu0 0
      %1333 = vperm.xlu0 %1332, %v750
      %v1334 = vpop.permute.xlu0 %1333
      %1337 = vset.pattern.permute.xlu0 0
      %1338 = vperm.xlu0 %1337, %v751
      %v1339 = vpop.permute.xlu0 %1338
      %1342 = vset.pattern.permute.xlu0 0
      %1343 = vperm.xlu0 %1342, %v752
      %v1344 = vpop.permute.xlu0 %1343
      %1347 = vset.pattern.permute.xlu0 0
      %1348 = vperm.xlu0 %1347, %v753
      %v1349 = vpop.permute.xlu0 %1348
      %1352 = vset.pattern.permute.xlu0 0
      %1353 = vperm.xlu0 %1352, %v754
      %v1354 = vpop.permute.xlu0 %1353
      %1357 = vset.pattern.permute.xlu0 0
      %1358 = vperm.xlu0 %1357, %v755
      %v1359 = vpop.permute.xlu0 %1358
      %1362 = vset.pattern.permute.xlu0 0
      %1363 = vperm.xlu0 %1362, %v756
      %v1364 = vpop.permute.xlu0 %1363
      %v1366 = vlaneseq
      %v1367 = vshrl.u32 %v1366, 7
      %v1368 = vsub.s32 0, %v1367
      %v1369 = vrot.slane %v1325, %v1368
      %v1370 = vmul.f32 %v1329, %v1369
      %v1371 = vmul.f32 %v1334, %v1369
      %v1372 = vmul.f32 %v1339, %v1369
      %v1373 = vmul.f32 %v1344, %v1369
      %v1374 = vmul.f32 %v1349, %v1369
      %v1375 = vmul.f32 %v1354, %v1369
      %v1376 = vmul.f32 %v1359, %v1369
      %v1377 = vmul.f32 %v1364, %v1369
      %v1378 = vadd.f32 %v1317, %v1370
      %v1379 = vadd.f32 %v1318, %v1371
      %v1380 = vadd.f32 %v1319, %v1372
      %v1381 = vadd.f32 %v1320, %v1373
      %v1382 = vadd.f32 %v1321, %v1374
      %v1383 = vadd.f32 %v1322, %v1375
      %v1384 = vadd.f32 %v1323, %v1376
      %v1385 = vadd.f32 %v1324, %v1377
      %v1386 = vld [vmem:[%s1 + $0x7] sm:$0x1]
      %1388 = vset.pattern.permute.xlu0 0
      %1389 = vperm.xlu0 %1388, %v757
      %v1390 = vpop.permute.xlu0 %1389
      %1393 = vset.pattern.permute.xlu0 0
      %1394 = vperm.xlu0 %1393, %v758
      %v1395 = vpop.permute.xlu0 %1394
      %1398 = vset.pattern.permute.xlu0 0
      %1399 = vperm.xlu0 %1398, %v759
      %v1400 = vpop.permute.xlu0 %1399
      %1403 = vset.pattern.permute.xlu0 0
      %1404 = vperm.xlu0 %1403, %v760
      %v1405 = vpop.permute.xlu0 %1404
      %1408 = vset.pattern.permute.xlu0 0
      %1409 = vperm.xlu0 %1408, %v761
      %v1410 = vpop.permute.xlu0 %1409
      %1413 = vset.pattern.permute.xlu0 0
      %1414 = vperm.xlu0 %1413, %v762
      %v1415 = vpop.permute.xlu0 %1414
      %1418 = vset.pattern.permute.xlu0 0
      %1419 = vperm.xlu0 %1418, %v763
      %v1420 = vpop.permute.xlu0 %1419
      %1423 = vset.pattern.permute.xlu0 0
      %1424 = vperm.xlu0 %1423, %v764
      %v1425 = vpop.permute.xlu0 %1424
      %v1427 = vlaneseq
      %v1428 = vshrl.u32 %v1427, 7
      %v1429 = vsub.s32 0, %v1428
      %v1430 = vrot.slane %v1386, %v1429
      %v1431 = vmul.f32 %v1390, %v1430
      %v1432 = vmul.f32 %v1395, %v1430
      %v1433 = vmul.f32 %v1400, %v1430
      %v1434 = vmul.f32 %v1405, %v1430
      %v1435 = vmul.f32 %v1410, %v1430
      %v1436 = vmul.f32 %v1415, %v1430
      %v1437 = vmul.f32 %v1420, %v1430
      %v1438 = vmul.f32 %v1425, %v1430
      %v1439 = vadd.f32 %v1378, %v1431
      %v1440 = vadd.f32 %v1379, %v1432
      %v1441 = vadd.f32 %v1380, %v1433
      %v1442 = vadd.f32 %v1381, %v1434
      %v1443 = vadd.f32 %v1382, %v1435
      %v1444 = vadd.f32 %v1383, %v1436
      %v1445 = vadd.f32 %v1384, %v1437
      %v1446 = vadd.f32 %v1385, %v1438
      %v1447 = vld [vmem:[%s1 + $0x8] sm:$0x1]
      %1449 = vset.pattern.permute.xlu0 0
      %1450 = vperm.xlu0 %1449, %v789
      %v1451 = vpop.permute.xlu0 %1450
      %1454 = vset.pattern.permute.xlu0 0
      %1455 = vperm.xlu0 %1454, %v790
      %v1456 = vpop.permute.xlu0 %1455
      %1459 = vset.pattern.permute.xlu0 0
      %1460 = vperm.xlu0 %1459, %v791
      %v1461 = vpop.permute.xlu0 %1460
      %1464 = vset.pattern.permute.xlu0 0
      %1465 = vperm.xlu0 %1464, %v792
      %v1466 = vpop.permute.xlu0 %1465
      %1469 = vset.pattern.permute.xlu0 0
      %1470 = vperm.xlu0 %1469, %v793
      %v1471 = vpop.permute.xlu0 %1470
      %1474 = vset.pattern.permute.xlu0 0
      %1475 = vperm.xlu0 %1474, %v794
      %v1476 = vpop.permute.xlu0 %1475
      %1479 = vset.pattern.permute.xlu0 0
      %1480 = vperm.xlu0 %1479, %v795
      %v1481 = vpop.permute.xlu0 %1480
      %1484 = vset.pattern.permute.xlu0 0
      %1485 = vperm.xlu0 %1484, %v796
      %v1486 = vpop.permute.xlu0 %1485
      %v1488 = vlaneseq
      %v1489 = vshrl.u32 %v1488, 7
      %v1490 = vsub.s32 0, %v1489
      %v1491 = vrot.slane %v1447, %v1490
      %v1492 = vmul.f32 %v1451, %v1491
      %v1493 = vmul.f32 %v1456, %v1491
      %v1494 = vmul.f32 %v1461, %v1491
      %v1495 = vmul.f32 %v1466, %v1491
      %v1496 = vmul.f32 %v1471, %v1491
      %v1497 = vmul.f32 %v1476, %v1491
      %v1498 = vmul.f32 %v1481, %v1491
      %v1499 = vmul.f32 %v1486, %v1491
      %v1500 = vadd.f32 %v1439, %v1492
      %v1501 = vadd.f32 %v1440, %v1493
      %v1502 = vadd.f32 %v1441, %v1494
      %v1503 = vadd.f32 %v1442, %v1495
      %v1504 = vadd.f32 %v1443, %v1496
      %v1505 = vadd.f32 %v1444, %v1497
      %v1506 = vadd.f32 %v1445, %v1498
      %v1507 = vadd.f32 %v1446, %v1499
      %v1508 = vmul.f32 %v1500, %v976
      %v1509 = vmul.f32 %v1501, %v981
      %v1510 = vmul.f32 %v1502, %v986
      %v1511 = vmul.f32 %v1503, %v991
      %v1512 = vmul.f32 %v1504, %v996
      %v1513 = vmul.f32 %v1505, %v1001
      %v1514 = vmul.f32 %v1506, %v1006
      %v1515 = vmul.f32 %v1507, %v1011
      %v1516 = vld [vmem:[%s6] sm:$0xff]
      %v1517 = vld [vmem:[%s6 + $0x8] sm:$0xff]
      %v1518 = vld [vmem:[%s6 + $0x10] sm:$0xff]
      %v1519 = vld [vmem:[%s6 + $0x18] sm:$0xff]
      %v1520 = vld [vmem:[%s6 + $0x20] sm:$0xff]
      %v1521 = vld [vmem:[%s6 + $0x28] sm:$0xff]
      %v1522 = vld [vmem:[%s6 + $0x30] sm:$0xff]
      %v1523 = vld [vmem:[%s6 + $0x38] sm:$0xff]
      %v1524 = vld [vmem:[%s6 + $0x40] sm:$0xff]
      %v1525 = vld [vmem:[%s6 + $0x48] sm:$0xff]
      %v1526 = vld [vmem:[%s6 + $0x50] sm:$0xff]
      %v1527 = vld [vmem:[%s6 + $0x58] sm:$0xff]
      %v1528 = vld [vmem:[%s6 + $0x60] sm:$0xff]
      %v1529 = vld [vmem:[%s6 + $0x68] sm:$0xff]
      %v1530 = vld [vmem:[%s6 + $0x70] sm:$0xff]
      %v1531 = vld [vmem:[%s6 + $0x78] sm:$0xff]
      %1532 = vmatprep.subr.mxu0 0.0
      %1533 = vmatpush1.msra.mxu0 %v1516
      %1534 = vmatprep.subr.mxu0 0.0
      %1535 = vmatpush1.msra.mxu0 %v1517
      %1536 = vmatprep.subr.mxu0 0.0
      %1537 = vmatpush1.msra.mxu0 %v1518
      %1538 = vmatprep.subr.mxu0 0.0
      %1539 = vmatpush1.msra.mxu0 %v1519
      %1540 = vmatprep.subr.mxu0 0.0
      %1541 = vmatpush1.msra.mxu0 %v1520
      %1542 = vmatprep.subr.mxu0 0.0
      %1543 = vmatpush1.msra.mxu0 %v1521
      %1544 = vmatprep.subr.mxu0 0.0
      %1545 = vmatpush1.msra.mxu0 %v1522
      %1546 = vmatprep.subr.mxu0 0.0
      %1547 = vmatpush1.msra.mxu0 %v1523
      %1548 = vmatprep.subr.mxu0 0.0
      %1549 = vmatpush1.msra.mxu0 %v1524
      %1550 = vmatprep.subr.mxu0 0.0
      %1551 = vmatpush1.msra.mxu0 %v1525
      %1552 = vmatprep.subr.mxu0 0.0
      %1553 = vmatpush1.msra.mxu0 %v1526
      %1554 = vmatprep.subr.mxu0 0.0
      %1555 = vmatpush1.msra.mxu0 %v1527
      %1556 = vmatprep.subr.mxu0 0.0
      %1557 = vmatpush1.msra.mxu0 %v1528
      %1558 = vmatprep.subr.mxu0 0.0
      %1559 = vmatpush1.msra.mxu0 %v1529
      %1560 = vmatprep.subr.mxu0 0.0
      %1561 = vmatpush1.msra.mxu0 %v1530
      %1562 = vmatprep.subr.mxu0 0.0
      %1563 = vmatpush1.msra.mxu0 %v1531
      %1564 = vmatprep.subr.mxu0 0.0
      %1565 = vmatpush1.msra.mxu0 0.0
      %1566 = vmatprep.subr.mxu0 0.0
      %1567 = vmatpush1.msra.mxu0 0.0
      %1568 = vmatprep.subr.mxu0 0.0
      %1569 = vmatpush1.msra.mxu0 0.0
      %1570 = vmatprep.subr.mxu0 0.0
      %1571 = vmatpush1.msra.mxu0 0.0
      %1572 = vmatprep.subr.mxu0 0.0
      %1573 = vmatpush1.msra.mxu0 0.0
      %1574 = vmatprep.subr.mxu0 0.0
      %1575 = vmatpush1.msra.mxu0 0.0
      %1576 = vmatprep.subr.mxu0 0.0
      %1577 = vmatpush1.msra.mxu0 0.0
      %1578 = vmatprep.subr.mxu0 0.0
      %1579 = vmatpush1.msra.mxu0 0.0
      %1580 = vmatprep.subr.mxu0 0.0
      %1581 = vmatpush1.msra.mxu0 0.0
      %1582 = vmatprep.subr.mxu0 0.0
      %1583 = vmatpush1.msra.mxu0 0.0
      %1584 = vmatprep.subr.mxu0 0.0
      %1585 = vmatpush1.msra.mxu0 0.0
      %1586 = vmatprep.subr.mxu0 0.0
      %1587 = vmatpush1.msra.mxu0 0.0
      %1588 = vmatprep.subr.mxu0 0.0
      %1589 = vmatpush1.msra.mxu0 0.0
      %1590 = vmatprep.subr.mxu0 0.0
      %1591 = vmatpush1.msra.mxu0 0.0
      %1592 = vmatprep.subr.mxu0 0.0
      %1593 = vmatpush1.msra.mxu0 0.0
      %1594 = vmatprep.subr.mxu0 0.0
      %1595 = vmatpush1.msra.mxu0 0.0
      %1596 = vmatprep.mubr.f32.mxu0 0.0
      %1597 = vmatmul.mubr.f32.gmra.mrb[0].mxu0 %v1508
      %v1598 = vpop.f32.mrb[0].mxu0
      %v1599 = vadd.f32 0.0, %v1598
      %v1600 = vpop.f32.mrb[0].mxu0
      %1601 = vmatprep.mubr.f32.mxu0 0.0
      %1602 = vmatmul.mubr.f32.gmra.mrb[0].mxu0 %v1509
      %v1603 = vpop.f32.mrb[0].mxu0
      %v1604 = vadd.f32 0.0, %v1603
      %v1605 = vpop.f32.mrb[0].mxu0
      %1606 = vmatprep.mubr.f32.mxu0 0.0
      %1607 = vmatmul.mubr.f32.gmra.mrb[0].mxu0 %v1510
      %v1608 = vpop.f32.mrb[0].mxu0
      %v1609 = vadd.f32 0.0, %v1608
      %v1610 = vpop.f32.mrb[0].mxu0
      %1611 = vmatprep.mubr.f32.mxu0 0.0
      %1612 = vmatmul.mubr.f32.gmra.mrb[0].mxu0 %v1511
      %v1613 = vpop.f32.mrb[0].mxu0
      %v1614 = vadd.f32 0.0, %v1613
      %v1615 = vpop.f32.mrb[0].mxu0
      %1616 = vmatprep.mubr.f32.mxu0 0.0
      %1617 = vmatmul.mubr.f32.gmra.mrb[0].mxu0 %v1512
      %v1618 = vpop.f32.mrb[0].mxu0
      %v1619 = vadd.f32 0.0, %v1618
      %v1620 = vpop.f32.mrb[0].mxu0
      %1621 = vmatprep.mubr.f32.mxu0 0.0
      %1622 = vmatmul.mubr.f32.gmra.mrb[0].mxu0 %v1513
      %v1623 = vpop.f32.mrb[0].mxu0
      %v1624 = vadd.f32 0.0, %v1623
      %v1625 = vpop.f32.mrb[0].mxu0
      %1626 = vmatprep.mubr.f32.mxu0 0.0
      %1627 = vmatmul.mubr.f32.gmra.mrb[0].mxu0 %v1514
      %v1628 = vpop.f32.mrb[0].mxu0
      %v1629 = vadd.f32 0.0, %v1628
      %v1630 = vpop.f32.mrb[0].mxu0
      %1631 = vmatprep.mubr.f32.mxu0 0.0
      %1632 = vmatmul.mubr.f32.gmra.mrb[0].mxu0 %v1515
      %v1633 = vpop.f32.mrb[0].mxu0
      %v1634 = vadd.f32 0.0, %v1633
      %v1635 = vpop.f32.mrb[0].mxu0
      %1636 = vdwg.mxu0
      %v1637 = vld [vmem:[%s7] sm:$0x1]
      %v1638 = vsel %vm453, 1, 0
      %v1639 = vsel %vm454, 1, 0
      %v1640 = vsel %vm455, 1, 0
      %v1641 = vsel %vm456, 1, 0
      %v1642 = vsel %vm457, 1, 0
      %v1643 = vsel %vm458, 1, 0
      %v1644 = vsel %vm459, 1, 0
      %v1645 = vsel %vm460, 1, 0
      %1646 = vset.pattern.permute.xlu0 0
      %1647 = vperm.xlu0 %1646, %v1638
      %v1648 = vpop.permute.xlu0 %1647
      %1649 = vset.pattern.permute.xlu0 0
      %1650 = vperm.xlu0 %1649, %v1639
      %v1651 = vpop.permute.xlu0 %1650
      %1652 = vset.pattern.permute.xlu0 0
      %1653 = vperm.xlu0 %1652, %v1640
      %v1654 = vpop.permute.xlu0 %1653
      %1655 = vset.pattern.permute.xlu0 0
      %1656 = vperm.xlu0 %1655, %v1641
      %v1657 = vpop.permute.xlu0 %1656
      %1658 = vset.pattern.permute.xlu0 0
      %1659 = vperm.xlu0 %1658, %v1642
      %v1660 = vpop.permute.xlu0 %1659
      %1661 = vset.pattern.permute.xlu0 0
      %1662 = vperm.xlu0 %1661, %v1643
      %v1663 = vpop.permute.xlu0 %1662
      %1664 = vset.pattern.permute.xlu0 0
      %1665 = vperm.xlu0 %1664, %v1644
      %v1666 = vpop.permute.xlu0 %1665
      %1667 = vset.pattern.permute.xlu0 0
      %1668 = vperm.xlu0 %1667, %v1645
      %v1669 = vpop.permute.xlu0 %1668
      %vm1670 = vcmp.eq.s32.totalorder %v1648, 1
      %vm1671 = vcmp.eq.s32.totalorder %v1651, 1
      %vm1672 = vcmp.eq.s32.totalorder %v1654, 1
      %vm1673 = vcmp.eq.s32.totalorder %v1657, 1
      %vm1674 = vcmp.eq.s32.totalorder %v1660, 1
      %vm1675 = vcmp.eq.s32.totalorder %v1663, 1
      %vm1676 = vcmp.eq.s32.totalorder %v1666, 1
      %vm1677 = vcmp.eq.s32.totalorder %v1669, 1
      %v1679 = vlaneseq
      %v1680 = vshrl.u32 %v1679, 7
      %v1681 = vsub.s32 0, %v1680
      %v1682 = vrot.slane %v1637, %v1681
      %v1684 = vsel %vm1670, %v1599, %v1682
      %v1685 = vsel %vm1671, %v1604, %v1682
      %v1686 = vsel %vm1672, %v1609, %v1682
      %v1687 = vsel %vm1673, %v1614, %v1682
      %v1688 = vsel %vm1674, %v1619, %v1682
      %v1689 = vsel %vm1675, %v1624, %v1682
      %v1690 = vsel %vm1676, %v1629, %v1682
      %v1691 = vsel %vm1677, %v1634, %v1682
      %vm1692 = vcmask 203776
      %1693 = vst.msk [vmem:[%s307] sm:$0xff] %vm1692, %v1684
      %1694 = vst.msk [vmem:[%s307 + $0x8] sm:$0xff] %vm1692, %v1685
      %1695 = vst.msk [vmem:[%s307 + $0x10] sm:$0xff] %vm1692, %v1686
      %1696 = vst.msk [vmem:[%s307 + $0x18] sm:$0xff] %vm1692, %v1687
      %1697 = vst.msk [vmem:[%s307 + $0x20] sm:$0xff] %vm1692, %v1688
      %1698 = vst.msk [vmem:[%s307 + $0x28] sm:$0xff] %vm1692, %v1689
      %1699 = vst.msk [vmem:[%s307 + $0x30] sm:$0xff] %vm1692, %v1690
      %1700 = vst.msk [vmem:[%s307 + $0x38] sm:$0xff] %vm1692, %v1691
      %s1701 = smul.u32 8, %s19
      %p1702 = scmp.lt.s32.totalorder %s1701, 15
      %s1703 = scalar_select %p1702, %s1701, 15
      %s1704 = smul.addr %s1703, 8
      %s1705 = scalar_lea.vmem %s8, %s1704
      // Predicated region
      $region53: #{tpu_custom_call.1} parent=51 // pred_check
        %p1706 = pneg %p210
      $region54: #{tpu_custom_call.1} parent=51 // pred_check_branch
        %1708 = sbr.rel (%p1706) target = $region56
      $region55: #{tpu_custom_call.1} parent=51 // pred_region
        %s1709 = smul.u32 8, %s19
      $region56: #{tpu_custom_call.1} parent=51 // pred_fallthru
        _
    $region52: #{tpu_custom_call.1} parent=5 // pred_fallthru
      _
    %p1710 = scmp.le.s32.totalorder 2, %s14
    // Predicated region
    $region57: #{tpu_custom_call.1} parent=5 // pred_check
      %p1711 = pneg %p1710
    $region58: #{tpu_custom_call.1} parent=5 // pred_check_branch
      %1713 = sbr.rel (%p1711) target = $region60
    $region59: #{tpu_custom_call.1} parent=5 // pred_region
      %s1714 = ssub.s32 %s14, 2
      // Predicated region
      $region61: #{tpu_custom_call.1} parent=59 // pred_check
        %p1715 = pneg %p216
      $region62: #{tpu_custom_call.1} parent=59 // pred_check_branch
        %1717 = sbr.rel (%p1715) target = $region64
      $region63: #{tpu_custom_call.1} parent=59 // pred_region
        %s1718 = smul.u32 8, %s20
        %p1719 = scmp.lt.s32.totalorder %s1718, 15
        %s1720 = scalar_select %p1719, %s1718, 15
        %s1721 = smul.addr %s1720, 8
        %s1722 = scalar_lea.vmem %s8, %s1721
      $region64: #{tpu_custom_call.1} parent=59 // pred_fallthru
        _
    $region60: #{tpu_custom_call.1} parent=5 // pred_fallthru
      _
  $region6: #{tpu_custom_call.1} parent=0 // loop_footer
    %s18 = sadd.s32 1, %s14
  $region7: #{tpu_custom_call.1} parent=0 // loop_footer_branch
    %13 = sbr.rel target = $region3
  $region8: #{tpu_custom_call.1} parent=0 // loop_exit
    _

</llo_original>
